<compile_context>
chip_gen: v6e
topology: v6e:2x2x1
jax: 0.10.0
libtpu: 0.0.40
codegen_flags: <defaults>
</compile_context>

<pallas_src>
import functools
import math

import jax
import jax.numpy as jnp
from jax.experimental import pallas as pl
from jax.experimental.pallas import tpu as pltpu


def _round_up(v, m):
    return ((v + m - 1) // m) * m


def _padded_bytes(rows, cols, itemsize):
    # VMEM buffers use (8, 128) native tiling; estimate with padded extents.
    return _round_up(max(rows, 1), 8) * _round_up(max(cols, 1), 128) * itemsize


def _mlp_kernel(x_ref, w1_ref, b1_ref, w2_ref, b2_ref, o_ref, *, vpu_first_matmul):
    # Hot path: matmul -> bias -> relu -> matmul -> bias, fused in VMEM.
    x = x_ref[...]                                   # (tm, C_in)
    tm_blk, c_in = x_ref.shape
    c_mid = w1_ref.shape[1]

    if vpu_first_matmul:
        # C_in is tiny: a K=C_in MXU contraction would waste the systolic
        # array, so do unrolled broadcast multiply-adds on the VPU instead.
        h = jnp.zeros((tm_blk, c_mid), jnp.float32) + b1_ref[...].astype(jnp.float32)
        for c in range(c_in):
            h = h + (x[:, c:c + 1].astype(jnp.float32)
                     * w1_ref[c:c + 1, :].astype(jnp.float32))
    else:
        h = jnp.dot(x, w1_ref[...], preferred_element_type=jnp.float32)
        h = h + b1_ref[...].astype(jnp.float32)

    h = jnp.maximum(h, 0.0)                          # ReLU (fp32 on the VPU)

    y = jnp.dot(h.astype(w2_ref.dtype), w2_ref[...],
                preferred_element_type=jnp.float32)
    y = y + b2_ref[...].astype(jnp.float32)
    o_ref[...] = y.astype(o_ref.dtype)


def _fused_mlp_2d(x2d, w1, b1_2d, w2, b2_2d, *, tm_target, vmem_budget_bytes,
                  vpu_first_matmul):
    """Fused MLP over a 2-D (N, C_in) matrix, tiled along rows."""
    n, c_in = x2d.shape
    c_mid = w1.shape[1]
    c_out = w2.shape[1]
    itemsize = jnp.dtype(x2d.dtype).itemsize

    # Grid-invariant weight blocks (double-buffered by the default pipeline).
    weight_vmem = 2 * (_padded_bytes(c_in, c_mid, itemsize)
                       + _padded_bytes(1, c_mid, itemsize)
                       + _padded_bytes(c_mid, c_out, itemsize)
                       + _padded_bytes(1, c_out, itemsize))

    def vmem_estimate(t):
        io = 2 * (_padded_bytes(t, c_in, itemsize) + _padded_bytes(t, c_out, itemsize))
        inter = _padded_bytes(t, c_mid, 4) + _padded_bytes(t, c_out, 4)  # fp32 h, y
        return weight_vmem + io + inter

    # Row tile: large (mem-bound kernel), but (a) multiple of 8 sublanes,
    # (b) grid keeps >= 2 steps for the two v7x TensorCores, (c) fits VMEM.
    tm_eff = _round_up(min(tm_target, max(n, 1)), 8)
    if n >= 16:
        tm_eff = min(tm_eff, _round_up(pl.cdiv(n, 2), 8))
    while tm_eff > 8 and vmem_estimate(tm_eff) > vmem_budget_bytes:
        tm_eff = max(8, _round_up(tm_eff // 2, 8))

    grid = (pl.cdiv(n, tm_eff),)                     # ragged last block handled by Pallas
    kernel = functools.partial(_mlp_kernel, vpu_first_matmul=vpu_first_matmul)

    vmem_limit = int(min(64 * 1024 * 1024,
                         max(32 * 1024 * 1024, vmem_estimate(tm_eff) + (8 << 20))))

    return pl.pallas_call(
        kernel,
        out_shape=jax.ShapeDtypeStruct((n, c_out), x2d.dtype),
        grid_spec=pltpu.PrefetchScalarGridSpec(
            num_scalar_prefetch=0,
            grid=grid,
            in_specs=[
                pl.BlockSpec((tm_eff, c_in), lambda i: (i, 0)),    # x tile
                pl.BlockSpec((c_in, c_mid), lambda i: (0, 0)),     # W1 (resident)
                pl.BlockSpec((1, c_mid), lambda i: (0, 0)),        # b1
                pl.BlockSpec((c_mid, c_out), lambda i: (0, 0)),    # W2 (resident)
                pl.BlockSpec((1, c_out), lambda i: (0, 0)),        # b2
            ],
            out_specs=pl.BlockSpec((tm_eff, c_out), lambda i: (i, 0)),
        ),
        compiler_params=pltpu.CompilerParams(
            dimension_semantics=("parallel",),
            vmem_limit_bytes=vmem_limit),
    )(x2d, w1, b1_2d, w2, b2_2d)


def _lane_pack_factor(c_in, c_mid, c_out):
    def f(c):
        return 128 // math.gcd(128, c)
    return math.lcm(f(c_in), f(c_mid), f(c_out))


@functools.partial(jax.jit, static_argnames=("tm", "vmem_budget_bytes"))
def mlp_pallas(x, w1, b1, w2, b2, *, tm=4096, vmem_budget_bytes=32 * 1024 * 1024):
    """x: (..., C_in) channels-last.  Returns (..., C_out) = relu(x@W1+b1)@W2+b2."""
    orig_shape = x.shape
    c_in = orig_shape[-1]
    c_mid = w1.shape[1]
    c_out = w2.shape[1]
    itemsize = jnp.dtype(x.dtype).itemsize

    x2d = x.reshape(-1, c_in)
    n = x2d.shape[0]

    r = _lane_pack_factor(c_in, c_mid, c_out)

    # Lane-packed fast path guards:
    #   * the row-major reshape must be exact (n % r == 0),
    #   * expanded block-diagonal weights must stay comfortably VMEM-resident,
    #   * the r-fold MXU FLOP blow-up must not push this mem-bound kernel past
    #     the f32-MXU roofline (arithmetic-intensity cap).
    exp_weight_bytes = r * r * (c_in * c_mid + c_mid * c_out) * itemsize
    flops_per_row = 2 * r * (c_in * c_mid + c_mid * c_out)
    bytes_per_row = (c_in + c_out) * itemsize
    use_packed = (
        r > 1
        and n > 0
        and n % r == 0
        and r <= 64
        and exp_weight_bytes <= 8 * 1024 * 1024
        and flops_per_row <= 1024 * bytes_per_row
    )

    common = dict(tm_target=tm, vmem_budget_bytes=vmem_budget_bytes)

    if use_packed:
        # Block-diagonal expansion: W_big[s*C+a, t*C'+b] = W[a, b] * (s == t).
        eye = jnp.eye(r, dtype=w1.dtype)
        w1_big = (eye[:, None, :, None]
                  * w1[None, :, None, :]).reshape(r * c_in, r * c_mid)
        w2_big = (eye.astype(w2.dtype)[:, None, :, None]
                  * w2[None, :, None, :]).reshape(r * c_mid, r * c_out)
        b1_big = jnp.tile(b1, r).reshape(1, r * c_mid)
        b2_big = jnp.tile(b2, r).reshape(1, r * c_out)

        xp = x2d.reshape(n // r, r * c_in)           # free, row-major
        outp = _fused_mlp_2d(xp, w1_big, b1_big, w2_big, b2_big,
                             vpu_first_matmul=False, **common)
        out2d = outp.reshape(n, c_out)               # free, row-major
    else:
        out2d = _fused_mlp_2d(x2d, w1, b1.reshape(1, c_mid), w2, b2.reshape(1, c_out),
                              vpu_first_matmul=(c_in <= 16), **common)

    return out2d.reshape(*orig_shape[:-1], c_out)


def init_mlp_params(key, in_channels, mid_channels, out_channels, dtype=jnp.float32):
    """Init mirroring torch.nn.Linear's U(-1/sqrt(fan_in), 1/sqrt(fan_in)).

    Weights are stored transposed relative to PyTorch (fan_in, fan_out) so the
    kernel can do x @ W directly.
    """
    k1, k2, k3, k4 = jax.random.split(key, 4)
    lim1 = 1.0 / jnp.sqrt(in_channels)
    lim2 = 1.0 / jnp.sqrt(mid_channels)
    w1 = jax.random.uniform(k1, (in_channels, mid_channels), dtype, -lim1, lim1)
    b1 = jax.random.uniform(k2, (mid_channels,), dtype, -lim1, lim1)
    w2 = jax.random.uniform(k3, (mid_channels, out_channels), dtype, -lim2, lim2)
    b2 = jax.random.uniform(k4, (out_channels,), dtype, -lim2, lim2)
    return w1, b1, w2, b2


def mlp_reference(x, w1, b1, w2, b2):
    h = jnp.maximum(x @ w1 + b1, 0.0)
    return h @ w2 + b2


if __name__ == "__main__":
    key = jax.random.PRNGKey(0)
    k_x, k_p, k_x2 = jax.random.split(key, 3)

    batch, H, W = 2, 16, 16
    in_channels, mid_channels, out_channels = 4, 32, 4

    # channels-last input (equivalent to the PyTorch tensor permuted to (B, H, W, C))
    x = jax.random.normal(k_x, (batch, H, W, in_channels), dtype=jnp.float32)
    w1, b1, w2, b2 = init_mlp_params(k_p, in_channels, mid_channels, out_channels)

    # N = 512 is a multiple of the packing factor R = 32 -> lane-packed fast path.
    out = jax.block_until_ready(mlp_pallas(x, w1, b1, w2, b2))
    ref = mlp_reference(x, w1, b1, w2, b2)
    assert out.shape == (batch, H, W, out_channels)
    assert jnp.allclose(out, ref, atol=1e-5, rtol=1e-5), "mismatch vs reference"

    # Ragged row count (N = 117, not a multiple of R or the row tile): exercises
    # the direct (VPU first-matmul) path with a partial last grid block.
    x_r = jax.random.normal(k_x2, (1, 9, 13, in_channels), dtype=jnp.float32)
    out_r = jax.block_until_ready(mlp_pallas(x_r, w1, b1, w2, b2))
    ref_r = mlp_reference(x_r, w1, b1, w2, b2)
    assert out_r.shape == (1, 9, 13, out_channels)
    assert jnp.allclose(out_r, ref_r, atol=1e-5, rtol=1e-5), "ragged mismatch vs reference"

    print("KERNEL_OK")
</pallas_src>

<mosaic_0001>
module attributes {stable_mosaic.version = 11 : i64} {
  func.func @_mlp_kernel(%arg0: i32, %arg1: memref<8x128xf32, #tpu.memory_space<vmem>>, %arg2: memref<128x1024xf32, #tpu.memory_space<vmem>>, %arg3: memref<1x1024xf32, #tpu.memory_space<vmem>>, %arg4: memref<1024x128xf32, #tpu.memory_space<vmem>>, %arg5: memref<1x128xf32, #tpu.memory_space<vmem>>, %arg6: memref<8x128xf32, #tpu.memory_space<vmem>>) attributes {dimension_semantics = [#tpu.dimension_semantics<parallel>], iteration_bounds = array<i64: 2>, scalar_prefetch = 0 : i64, scratch_operands = 0 : i64, tpu.core_type = #tpu.core_type<tc>, window_params = [{transform_indices = @transform_0, window_bounds = array<i64: 8, 128>}, {pipeline_mode = #tpu.pipeline_mode<synchronous>, transform_indices = @transform_1, window_bounds = array<i64: 128, 1024>}, {pipeline_mode = #tpu.pipeline_mode<synchronous>, transform_indices = @transform_2, window_bounds = array<i64: 1, 1024>}, {pipeline_mode = #tpu.pipeline_mode<synchronous>, transform_indices = @transform_3, window_bounds = array<i64: 1024, 128>}, {pipeline_mode = #tpu.pipeline_mode<synchronous>, transform_indices = @transform_4, window_bounds = array<i64: 1, 128>}, {transform_indices = @transform_5, window_bounds = array<i64: 8, 128>}]} {
    %c0 = arith.constant 0 : index
    %c0_0 = arith.constant 0 : index
    %0 = vector.load %arg1[%c0, %c0_0] : memref<8x128xf32, #tpu.memory_space<vmem>>, vector<8x128xf32>
    %c0_1 = arith.constant 0 : index
    %c0_2 = arith.constant 0 : index
    %1 = vector.load %arg2[%c0_1, %c0_2] : memref<128x1024xf32, #tpu.memory_space<vmem>>, vector<128x1024xf32>
    %cst = arith.constant dense<0.000000e+00> : vector<8x1024xf32>
    %2 = tpu.matmul %0, %1, %cst {dimension_numbers = #tpu.dot_dimension_numbers<[1], [0], [0], [1], [0, 0, 1, 1], [], []>} : vector<8x128xf32>, vector<128x1024xf32>, vector<8x1024xf32> -> vector<8x1024xf32>
    %c0_3 = arith.constant 0 : index
    %c0_4 = arith.constant 0 : index
    %3 = vector.load %arg3[%c0_3, %c0_4] : memref<1x1024xf32, #tpu.memory_space<vmem>>, vector<1x1024xf32>
    %4 = vector.broadcast %3 : vector<1x1024xf32> to vector<8x1024xf32>
    %5 = arith.addf %2, %4 : vector<8x1024xf32>
    %cst_5 = arith.constant 0.000000e+00 : f32
    %6 = vector.broadcast %cst_5 : f32 to vector<8x1024xf32>
    %7 = arith.maximumf %5, %6 : vector<8x1024xf32>
    %c0_6 = arith.constant 0 : index
    %c0_7 = arith.constant 0 : index
    %8 = vector.load %arg4[%c0_6, %c0_7] : memref<1024x128xf32, #tpu.memory_space<vmem>>, vector<1024x128xf32>
    %cst_8 = arith.constant dense<0.000000e+00> : vector<8x128xf32>
    %9 = tpu.matmul %7, %8, %cst_8 {dimension_numbers = #tpu.dot_dimension_numbers<[1], [0], [0], [1], [0, 0, 1, 1], [], []>} : vector<8x1024xf32>, vector<1024x128xf32>, vector<8x128xf32> -> vector<8x128xf32>
    %c0_9 = arith.constant 0 : index
    %c0_10 = arith.constant 0 : index
    %10 = vector.load %arg5[%c0_9, %c0_10] : memref<1x128xf32, #tpu.memory_space<vmem>>, vector<1x128xf32>
    %11 = vector.broadcast %10 : vector<1x128xf32> to vector<8x128xf32>
    %12 = arith.addf %9, %11 : vector<8x128xf32>
    %c0_11 = arith.constant 0 : index
    %c0_12 = arith.constant 0 : index
    %13 = vector.load %arg6[%c0_11, %c0_12] : memref<8x128xf32, #tpu.memory_space<vmem>>, vector<8x128xf32>
    tpu.vector_store %arg6[%c0_11, %c0_12], %12 {strides = array<i32>} : memref<8x128xf32, #tpu.memory_space<vmem>>, vector<8x128xf32>,
    return
  }
  func.func @transform_0(%arg0: i32) -> (i32, i32) {
    %c0_i32 = arith.constant 0 : i32
    %c0_i32_0 = arith.constant 0 : i32
    return %arg0, %c0_i32 : i32, i32
  }
  func.func @transform_1(%arg0: i32) -> (i32, i32) {
    %c0_i32 = arith.constant 0 : i32
    %c0_i32_0 = arith.constant 0 : i32
    %c0_i32_1 = arith.constant 0 : i32
    return %c0_i32, %c0_i32_0 : i32, i32
  }
  func.func @transform_2(%arg0: i32) -> (i32, i32) {
    %c0_i32 = arith.constant 0 : i32
    %c0_i32_0 = arith.constant 0 : i32
    %c0_i32_1 = arith.constant 0 : i32
    return %c0_i32, %c0_i32_0 : i32, i32
  }
  func.func @transform_3(%arg0: i32) -> (i32, i32) {
    %c0_i32 = arith.constant 0 : i32
    %c0_i32_0 = arith.constant 0 : i32
    %c0_i32_1 = arith.constant 0 : i32
    return %c0_i32, %c0_i32_0 : i32, i32
  }
  func.func @transform_4(%arg0: i32) -> (i32, i32) {
    %c0_i32 = arith.constant 0 : i32
    %c0_i32_0 = arith.constant 0 : i32
    %c0_i32_1 = arith.constant 0 : i32
    return %c0_i32, %c0_i32_0 : i32, i32
  }
  func.func @transform_5(%arg0: i32) -> (i32, i32) {
    %c0_i32 = arith.constant 0 : i32
    %c0_i32_0 = arith.constant 0 : i32
    return %arg0, %c0_i32 : i32, i32
  }
}

</mosaic_0001>

<llo_original>
// kernel: tile.13
$region0: #{tile.13}
  #allocation0 [shape = 's32[1]{0}', space=sflag, size = 0x4, scoped, tag = 'scoped memory for tile.13']
  %s0 = inlined_call_operand.vmem [shape: f32[32], index: 0, kind: input, shape index: {}]
  %s1 = inlined_call_operand.vmem [shape: f32[32,32], index: 1, kind: output, shape index: {}]
  // Predicated region
  $region2: #{tile.13} parent=0 // pred_check
    _
  $region3: #{tile.13} parent=0 // pred_check_branch
    %3 = sbr.rel (0) target = $region5
  $region4: #{tile.13} parent=0 // pred_region
    _
  $region5: #{tile.13} parent=0 // pred_fallthru
    _
  %v4 = vld [vmem:[%s0] ss:$0 sm:$0xff]
  %5 = vst [vmem:[%s1] sm:$0xff] %v4
  %s6 = scalar_lea.vmem %s1, 8
  %7 = vst [vmem:[%s6] sm:$0xff] %v4
  %s8 = scalar_lea.vmem %s1, 16
  %9 = vst [vmem:[%s8] sm:$0xff] %v4
  %s10 = scalar_lea.vmem %s1, 24
  %11 = vst [vmem:[%s10] sm:$0xff] %v4

// kernel: tile.14
$region0: #{tile.14}
  %s0 = inlined_call_operand.vmem [shape: f32[32,32], index: 0, kind: input, shape index: {}]
  %s1 = inlined_call_operand.vmem [shape: f32[1,1024], index: 1, kind: output, shape index: {}]
  $region1: #{tile.14} parent=0
    #allocation0 [shape = 'u8[32768]{0}', space=vmem, size = 0x8000, scoped, tag = 'scoped mem for output reshape']
    %v2 = vld [vmem:[%s0] ss:$4 sm:$0xff]
    %vm3 = vcmask 261120
    %4 = vst.msk [vmem:[#allocation0] ss:$8 sm:$0xf] %vm3, %v2
    %5 = vst.msk [vmem:[#allocation0] ss:$8 sm:$0xf0] %vm3, %v2
    %s6 = scalar_lea.vmem %s0, 3
    %v7 = vld [vmem:[%s6] ss:$4 sm:$0xff]
    %8 = vrot.lane.b32.xlu0 %v7, 96
    %v9 = vpop.permute.xlu0 %8
    %vm10 = vcmask 1048320
    %11 = vst.msk [vmem:[#allocation0] ss:$8 sm:$0xf] %vm10, %v9
    %12 = vst.msk [vmem:[#allocation0] ss:$8 sm:$0xf0] %vm10, %v9
    %s13 = scalar_lea.vmem %s0, 2
    %v14 = vld [vmem:[%s13] ss:$4 sm:$0xff]
    %15 = vrot.lane.b32.xlu0 %v14, 64
    %v16 = vpop.permute.xlu0 %15
    %vm17 = vcmask 785920
    %18 = vst.msk [vmem:[#allocation0] ss:$8 sm:$0xf] %vm17, %v16
    %19 = vst.msk [vmem:[#allocation0] ss:$8 sm:$0xf0] %vm17, %v16
    %s20 = scalar_lea.vmem %s0, 1
    %v21 = vld [vmem:[%s20] ss:$4 sm:$0xff]
    %22 = vrot.lane.b32.xlu0 %v21, 32
    %v23 = vpop.permute.xlu0 %22
    %vm24 = vcmask 523520
    %25 = vst.msk [vmem:[#allocation0] ss:$8 sm:$0xf] %vm24, %v23
    %26 = vst.msk [vmem:[#allocation0] ss:$8 sm:$0xf0] %vm24, %v23
    %s28 = sshll.u32 1, 1
    %s29 = ssub.s32 %s28, 1
    %v31 = vld [vmem:[#allocation0] sm:%s29]
    %s32 = sshll.u32 1, 1
    %s33 = ssub.s32 %s32, 1
    %34 = vst [vmem:[%s1] sm:%s33] %v31
    %s35 = scalar_lea.vmem [#allocation0], 8
    %v36 = vld [vmem:[%s35] sm:%s29]
    %s37 = sshll.u32 1, 1
    %s38 = ssub.s32 %s37, 1
    %s39 = scalar_lea.vmem %s1, 1
    %40 = vst [vmem:[%s39] sm:%s38] %v36
    %s41 = scalar_lea.vmem [#allocation0], 16
    %v42 = vld [vmem:[%s41] sm:%s29]
    %s43 = sshll.u32 1, 1
    %s44 = ssub.s32 %s43, 1
    %s45 = smul.addr 1, 2
    %s46 = scalar_lea.vmem %s1, %s45
    %47 = vst [vmem:[%s46] sm:%s44] %v42
    %s48 = scalar_lea.vmem [#allocation0], 24
    %v49 = vld [vmem:[%s48] sm:%s29]
    %s50 = sshll.u32 1, 1
    %s51 = ssub.s32 %s50, 1
    %s52 = smul.addr 1, 3
    %s53 = scalar_lea.vmem %s1, %s52
    %54 = vst [vmem:[%s53] sm:%s51] %v49
    %s55 = scalar_lea.vmem [#allocation0], 32
    %v56 = vld [vmem:[%s55] sm:%s29]
    %s57 = sshll.u32 1, 1
    %s58 = ssub.s32 %s57, 1
    %s59 = smul.addr 1, 4
    %s60 = scalar_lea.vmem %s1, %s59
    %61 = vst [vmem:[%s60] sm:%s58] %v56
    %s62 = scalar_lea.vmem [#allocation0], 40
    %v63 = vld [vmem:[%s62] sm:%s29]
    %s64 = sshll.u32 1, 1
    %s65 = ssub.s32 %s64, 1
    %s66 = smul.addr 1, 5
    %s67 = scalar_lea.vmem %s1, %s66
    %68 = vst [vmem:[%s67] sm:%s65] %v63
    %s69 = scalar_lea.vmem [#allocation0], 48
    %v70 = vld [vmem:[%s69] sm:%s29]
    %s71 = sshll.u32 1, 1
    %s72 = ssub.s32 %s71, 1
    %s73 = smul.addr 1, 6
    %s74 = scalar_lea.vmem %s1, %s73
    %75 = vst [vmem:[%s74] sm:%s72] %v70
    %s76 = scalar_lea.vmem [#allocation0], 56
    %v77 = vld [vmem:[%s76] sm:%s29]
    %s78 = sshll.u32 1, 1
    %s79 = ssub.s32 %s78, 1
    %s80 = smul.addr 1, 7
    %s81 = scalar_lea.vmem %s1, %s80
    %82 = vst [vmem:[%s81] sm:%s79] %v77

// kernel: tile.18
$region0: #{tile.18}
  #allocation0 [shape = 's32[1]{0}', space=sflag, size = 0x4, scoped, tag = 'scoped memory for tile.18']
  %s0 = inlined_call_operand.vmem [shape: f32[4], index: 0, kind: input, shape index: {}]
  %s1 = inlined_call_operand.vmem [shape: f32[32,4], index: 1, kind: output, shape index: {}]
  // Predicated region
  $region2: #{tile.18} parent=0 // pred_check
    _
  $region3: #{tile.18} parent=0 // pred_check_branch
    %3 = sbr.rel (0) target = $region5
  $region4: #{tile.18} parent=0 // pred_region
    _
  $region5: #{tile.18} parent=0 // pred_fallthru
    _
  %v4 = vld [vmem:[%s0] ss:$0 sm:$0xff]
  %5 = vst [vmem:[%s1] sm:$0xff] %v4
  %s6 = scalar_lea.vmem %s1, 8
  %7 = vst [vmem:[%s6] sm:$0xff] %v4
  %s8 = scalar_lea.vmem %s1, 16
  %9 = vst [vmem:[%s8] sm:$0xff] %v4
  %s10 = scalar_lea.vmem %s1, 24
  %11 = vst [vmem:[%s10] sm:$0xff] %v4

// kernel: tile.19
$region0: #{tile.19}
  %s0 = inlined_call_operand.vmem [shape: f32[32,4], index: 0, kind: input, shape index: {}]
  %s1 = inlined_call_operand.vmem [shape: f32[1,128], index: 1, kind: output, shape index: {}]
  $region1: #{tile.19} parent=0
    #allocation0 [shape = 'u8[4096]{0}', space=vmem, size = 0x1000, scoped, tag = 'scoped mem for output reshape']
    %v2 = vld [vmem:[%s0] sm:$0x1]
    %vm3 = vcmask 31744
    %4 = vst.msk [vmem:[#allocation0] sm:$0x1] %vm3, %v2
    %s5 = scalar_lea.vmem %s0, 31
    %v6 = vld [vmem:[%s5] sm:$0x1]
    %7 = vrot.lane.b32.xlu0 %v6, 124
    %v8 = vpop.permute.xlu0 %7
    %vm9 = vcmask 1048544
    %10 = vst.msk [vmem:[#allocation0] sm:$0x1] %vm9, %v8
    %s11 = scalar_lea.vmem %s0, 30
    %v12 = vld [vmem:[%s11] sm:$0x1]
    %13 = vrot.lane.b32.xlu0 %v12, 120
    %v14 = vpop.permute.xlu0 %13
    %vm15 = vcmask 1015744
    %16 = vst.msk [vmem:[#allocation0] sm:$0x1] %vm15, %v14
    %s17 = scalar_lea.vmem %s0, 29
    %v18 = vld [vmem:[%s17] sm:$0x1]
    %19 = vrot.lane.b32.xlu0 %v18, 116
    %v20 = vpop.permute.xlu0 %19
    %vm21 = vcmask 982944
    %22 = vst.msk [vmem:[#allocation0] sm:$0x1] %vm21, %v20
    %s23 = scalar_lea.vmem %s0, 28
    %v24 = vld [vmem:[%s23] sm:$0x1]
    %25 = vrot.lane.b32.xlu0 %v24, 112
    %v26 = vpop.permute.xlu0 %25
    %vm27 = vcmask 950144
    %28 = vst.msk [vmem:[#allocation0] sm:$0x1] %vm27, %v26
    %s29 = scalar_lea.vmem %s0, 27
    %v30 = vld [vmem:[%s29] sm:$0x1]
    %31 = vrot.lane.b32.xlu0 %v30, 108
    %v32 = vpop.permute.xlu0 %31
    %vm33 = vcmask 917344
    %34 = vst.msk [vmem:[#allocation0] sm:$0x1] %vm33, %v32
    %s35 = scalar_lea.vmem %s0, 26
    %v36 = vld [vmem:[%s35] sm:$0x1]
    %37 = vrot.lane.b32.xlu0 %v36, 104
    %v38 = vpop.permute.xlu0 %37
    %vm39 = vcmask 884544
    %40 = vst.msk [vmem:[#allocation0] sm:$0x1] %vm39, %v38
    %s41 = scalar_lea.vmem %s0, 25
    %v42 = vld [vmem:[%s41] sm:$0x1]
    %43 = vrot.lane.b32.xlu0 %v42, 100
    %v44 = vpop.permute.xlu0 %43
    %vm45 = vcmask 851744
    %46 = vst.msk [vmem:[#allocation0] sm:$0x1] %vm45, %v44
    %s47 = scalar_lea.vmem %s0, 24
    %v48 = vld [vmem:[%s47] sm:$0x1]
    %49 = vrot.lane.b32.xlu0 %v48, 96
    %v50 = vpop.permute.xlu0 %49
    %vm51 = vcmask 818944
    %52 = vst.msk [vmem:[#allocation0] sm:$0x1] %vm51, %v50
    %s53 = scalar_lea.vmem %s0, 23
    %v54 = vld [vmem:[%s53] sm:$0x1]
    %55 = vrot.lane.b32.xlu0 %v54, 92
    %v56 = vpop.permute.xlu0 %55
    %vm57 = vcmask 786144
    %58 = vst.msk [vmem:[#allocation0] sm:$0x1] %vm57, %v56
    %s59 = scalar_lea.vmem %s0, 22
    %v60 = vld [vmem:[%s59] sm:$0x1]
    %61 = vrot.lane.b32.xlu0 %v60, 88
    %v62 = vpop.permute.xlu0 %61
    %vm63 = vcmask 753344
    %64 = vst.msk [vmem:[#allocation0] sm:$0x1] %vm63, %v62
    %s65 = scalar_lea.vmem %s0, 21
    %v66 = vld [vmem:[%s65] sm:$0x1]
    %67 = vrot.lane.b32.xlu0 %v66, 84
    %v68 = vpop.permute.xlu0 %67
    %vm69 = vcmask 720544
    %70 = vst.msk [vmem:[#allocation0] sm:$0x1] %vm69, %v68
    %s71 = scalar_lea.vmem %s0, 20
    %v72 = vld [vmem:[%s71] sm:$0x1]
    %73 = vrot.lane.b32.xlu0 %v72, 80
    %v74 = vpop.permute.xlu0 %73
    %vm75 = vcmask 687744
    %76 = vst.msk [vmem:[#allocation0] sm:$0x1] %vm75, %v74
    %s77 = scalar_lea.vmem %s0, 19
    %v78 = vld [vmem:[%s77] sm:$0x1]
    %79 = vrot.lane.b32.xlu0 %v78, 76
    %v80 = vpop.permute.xlu0 %79
    %vm81 = vcmask 654944
    %82 = vst.msk [vmem:[#allocation0] sm:$0x1] %vm81, %v80
    %s83 = scalar_lea.vmem %s0, 18
    %v84 = vld [vmem:[%s83] sm:$0x1]
    %85 = vrot.lane.b32.xlu0 %v84, 72
    %v86 = vpop.permute.xlu0 %85
    %vm87 = vcmask 622144
    %88 = vst.msk [vmem:[#allocation0] sm:$0x1] %vm87, %v86
    %s89 = scalar_lea.vmem %s0, 17
    %v90 = vld [vmem:[%s89] sm:$0x1]
    %91 = vrot.lane.b32.xlu0 %v90, 68
    %v92 = vpop.permute.xlu0 %91
    %vm93 = vcmask 589344
    %94 = vst.msk [vmem:[#allocation0] sm:$0x1] %vm93, %v92
    %s95 = scalar_lea.vmem %s0, 16
    %v96 = vld [vmem:[%s95] sm:$0x1]
    %97 = vrot.lane.b32.xlu0 %v96, 64
    %v98 = vpop.permute.xlu0 %97
    %vm99 = vcmask 556544
    %100 = vst.msk [vmem:[#allocation0] sm:$0x1] %vm99, %v98
    %s101 = scalar_lea.vmem %s0, 15
    %v102 = vld [vmem:[%s101] sm:$0x1]
    %103 = vrot.lane.b32.xlu0 %v102, 60
    %v104 = vpop.permute.xlu0 %103
    %vm105 = vcmask 523744
    %106 = vst.msk [vmem:[#allocation0] sm:$0x1] %vm105, %v104
    %s107 = scalar_lea.vmem %s0, 14
    %v108 = vld [vmem:[%s107] sm:$0x1]
    %109 = vrot.lane.b32.xlu0 %v108, 56
    %v110 = vpop.permute.xlu0 %109
    %vm111 = vcmask 490944
    %112 = vst.msk [vmem:[#allocation0] sm:$0x1] %vm111, %v110
    %s113 = scalar_lea.vmem %s0, 13
    %v114 = vld [vmem:[%s113] sm:$0x1]
    %115 = vrot.lane.b32.xlu0 %v114, 52
    %v116 = vpop.permute.xlu0 %115
    %vm117 = vcmask 458144
    %118 = vst.msk [vmem:[#allocation0] sm:$0x1] %vm117, %v116
    %s119 = scalar_lea.vmem %s0, 12
    %v120 = vld [vmem:[%s119] sm:$0x1]
    %121 = vrot.lane.b32.xlu0 %v120, 48
    %v122 = vpop.permute.xlu0 %121
    %vm123 = vcmask 425344
    %124 = vst.msk [vmem:[#allocation0] sm:$0x1] %vm123, %v122
    %s125 = scalar_lea.vmem %s0, 11
    %v126 = vld [vmem:[%s125] sm:$0x1]
    %127 = vrot.lane.b32.xlu0 %v126, 44
    %v128 = vpop.permute.xlu0 %127
    %vm129 = vcmask 392544
    %130 = vst.msk [vmem:[#allocation0] sm:$0x1] %vm129, %v128
    %s131 = scalar_lea.vmem %s0, 10
    %v132 = vld [vmem:[%s131] sm:$0x1]
    %133 = vrot.lane.b32.xlu0 %v132, 40
    %v134 = vpop.permute.xlu0 %133
    %vm135 = vcmask 359744
    %136 = vst.msk [vmem:[#allocation0] sm:$0x1] %vm135, %v134
    %s137 = scalar_lea.vmem %s0, 9
    %v138 = vld [vmem:[%s137] sm:$0x1]
    %139 = vrot.lane.b32.xlu0 %v138, 36
    %v140 = vpop.permute.xlu0 %139
    %vm141 = vcmask 326944
    %142 = vst.msk [vmem:[#allocation0] sm:$0x1] %vm141, %v140
    %s143 = scalar_lea.vmem %s0, 8
    %v144 = vld [vmem:[%s143] sm:$0x1]
    %145 = vrot.lane.b32.xlu0 %v144, 32
    %v146 = vpop.permute.xlu0 %145
    %vm147 = vcmask 294144
    %148 = vst.msk [vmem:[#allocation0] sm:$0x1] %vm147, %v146
    %s149 = scalar_lea.vmem %s0, 7
    %v150 = vld [vmem:[%s149] sm:$0x1]
    %151 = vrot.lane.b32.xlu0 %v150, 28
    %v152 = vpop.permute.xlu0 %151
    %vm153 = vcmask 261344
    %154 = vst.msk [vmem:[#allocation0] sm:$0x1] %vm153, %v152
    %s155 = scalar_lea.vmem %s0, 6
    %v156 = vld [vmem:[%s155] sm:$0x1]
    %157 = vrot.lane.b32.xlu0 %v156, 24
    %v158 = vpop.permute.xlu0 %157
    %vm159 = vcmask 228544
    %160 = vst.msk [vmem:[#allocation0] sm:$0x1] %vm159, %v158
    %s161 = scalar_lea.vmem %s0, 5
    %v162 = vld [vmem:[%s161] sm:$0x1]
    %163 = vrot.lane.b32.xlu0 %v162, 20
    %v164 = vpop.permute.xlu0 %163
    %vm165 = vcmask 195744
    %166 = vst.msk [vmem:[#allocation0] sm:$0x1] %vm165, %v164
    %s167 = scalar_lea.vmem %s0, 4
    %v168 = vld [vmem:[%s167] sm:$0x1]
    %169 = vrot.lane.b32.xlu0 %v168, 16
    %v170 = vpop.permute.xlu0 %169
    %vm171 = vcmask 162944
    %172 = vst.msk [vmem:[#allocation0] sm:$0x1] %vm171, %v170
    %s173 = scalar_lea.vmem %s0, 3
    %v174 = vld [vmem:[%s173] sm:$0x1]
    %175 = vrot.lane.b32.xlu0 %v174, 12
    %v176 = vpop.permute.xlu0 %175
    %vm177 = vcmask 130144
    %178 = vst.msk [vmem:[#allocation0] sm:$0x1] %vm177, %v176
    %s179 = scalar_lea.vmem %s0, 2
    %v180 = vld [vmem:[%s179] sm:$0x1]
    %181 = vrot.lane.b32.xlu0 %v180, 8
    %v182 = vpop.permute.xlu0 %181
    %vm183 = vcmask 97344
    %184 = vst.msk [vmem:[#allocation0] sm:$0x1] %vm183, %v182
    %s185 = scalar_lea.vmem %s0, 1
    %v186 = vld [vmem:[%s185] sm:$0x1]
    %187 = vrot.lane.b32.xlu0 %v186, 4
    %v188 = vpop.permute.xlu0 %187
    %vm189 = vcmask 64544
    %190 = vst.msk [vmem:[#allocation0] sm:$0x1] %vm189, %v188
    %s192 = sshll.u32 1, 1
    %s193 = ssub.s32 %s192, 1
    %v195 = vld [vmem:[#allocation0] sm:%s193]
    %s196 = sshll.u32 1, 1
    %s197 = ssub.s32 %s196, 1
    %198 = vst [vmem:[%s1] sm:%s197] %v195

// kernel: mlp_pallas.1
$region0: #{mlp_pallas.1}
  #allocation0 [shape = 'u32[]', space=smem, size = 0x4, offset = 0x4, fixed_abs, tag = 'smem constant byte address 0x4 - core index']
  #allocation1 [shape = 'u32[144,128]{1,0:T(1,128)}', space=vmem, size = 0x12000, scoped, tag = 'internal scratch']
  %s0 = inlined_call_operand.vmem [shape: f32[16,128], index: 0, kind: input, shape index: {}]
  %s1 = inlined_call_operand.vmem [shape: f32[128,1024], index: 1, kind: input, shape index: {}]
  %s2 = inlined_call_operand.vmem [shape: f32[1,1024], index: 2, kind: input, shape index: {}]
  %s3 = inlined_call_operand.vmem [shape: f32[1024,128], index: 3, kind: input, shape index: {}]
  %s4 = inlined_call_operand.vmem [shape: f32[1,128], index: 4, kind: input, shape index: {}]
  %s5 = inlined_call_operand.vmem [shape: f32[16,128], index: 5, kind: output, shape index: {}]
  %s6 = sld [smem:[#allocation0]]
  $region53: #{mlp_pallas.1} parent=0
    _
  %s8 = ssub.s32 1, %s6
  %s9 = scalar_select 0, %s8, %s6
  loop: start=0, step=1, limit=4
  $region2: #{mlp_pallas.1} parent=0 // loop_pre_header
    _
  $region3: #{mlp_pallas.1} parent=0 // loop_header
    %s11 = sphi 0, %s15
    %p12 = scmp.ge.s32.totalorder %s11, 4
    %s21 = sphi 0, %s23
    %s24 = sphi 0, %s21
    %s25 = sphi 0, %s24
    %s41 = sphi 0, %s25
    %s45 = sphi 0, %s45
    %s47 = sphi 0, %s45
    %s48 = sphi 0, %s47
    %s62 = sphi 0, %s48
    %s66 = sphi 0, %s66
    %s68 = sphi 0, %s66
    %s69 = sphi 0, %s68
    %s83 = sphi 0, %s69
    %s87 = sphi 0, %s87
    %s89 = sphi 0, %s87
    %s90 = sphi 0, %s89
    %s104 = sphi 0, %s90
    %s108 = sphi 0, %s108
    %s110 = sphi 0, %s108
    %s111 = sphi 0, %s110
    %s125 = sphi 0, %s111
    %s131 = sphi 0, %s133
    %s134 = sphi 0, %s131
    %s135 = sphi 0, %s134
    %s151 = sphi 0, %s135
  $region4: #{mlp_pallas.1} parent=0 // loop_header_branch
    %14 = sbr.rel (%p12) target = $region8
  $region5: #{mlp_pallas.1} parent=0 // loop_body
    %s16 = ssub.s32 %s11, 1
    %s17 = ssub.s32 %s11, 2
    %s18 = sadd.s32 %s11, 1
    %s19 = ssub.s32 %s11, %s18
    %p20 = scmp.eq.s32.totalorder %s19, 0
    %s22 = sadd.s32 %s21, 1
    %s23 = scalar_select %p20, %s21, %s22
    %p26 = pneg %p20
    %p27 = scmp.eq.s32.totalorder %s11, 1
    %p28 = por %p26, %p27
    %p29 = scmp.ne.s32.totalorder %s21, %s24
    %p30 = scmp.eq.s32.totalorder %s11, 0
    %p31 = por %p29, %p30
    %p32 = scmp.ne.s32.totalorder %s21, %s24
    %p33 = scmp.eq.s32.totalorder %s16, 1
    %p34 = por %p32, %p33
    %p35 = scmp.ne.s32.totalorder %s24, %s25
    %p36 = scmp.eq.s32.totalorder %s16, 0
    %p37 = por %p35, %p36
    %p38 = scmp.ne.s32.totalorder %s24, %s25
    %p39 = scmp.eq.s32.totalorder %s17, 1
    %p40 = por %p38, %p39
    %p42 = scmp.ne.s32.totalorder %s25, %s41
    %p43 = scmp.eq.s32.totalorder %s17, 0
    %p44 = por %p42, %p43
    %s46 = sadd.s32 %s45, 1
    %p49 = scmp.eq.s32.totalorder %s11, 1
    %p50 = scmp.ne.s32.totalorder %s45, %s47
    %p51 = scmp.eq.s32.totalorder %s11, 0
    %p52 = por %p50, %p51
    %p53 = scmp.ne.s32.totalorder %s45, %s47
    %p54 = scmp.eq.s32.totalorder %s16, 1
    %p55 = por %p53, %p54
    %p56 = scmp.ne.s32.totalorder %s47, %s48
    %p57 = scmp.eq.s32.totalorder %s16, 0
    %p58 = por %p56, %p57
    %p59 = scmp.ne.s32.totalorder %s47, %s48
    %p60 = scmp.eq.s32.totalorder %s17, 1
    %p61 = por %p59, %p60
    %p63 = scmp.ne.s32.totalorder %s48, %s62
    %p64 = scmp.eq.s32.totalorder %s17, 0
    %p65 = por %p63, %p64
    %s67 = sadd.s32 %s66, 1
    %p70 = scmp.eq.s32.totalorder %s11, 1
    %p71 = scmp.ne.s32.totalorder %s66, %s68
    %p72 = scmp.eq.s32.totalorder %s11, 0
    %p73 = por %p71, %p72
    %p74 = scmp.ne.s32.totalorder %s66, %s68
    %p75 = scmp.eq.s32.totalorder %s16, 1
    %p76 = por %p74, %p75
    %p77 = scmp.ne.s32.totalorder %s68, %s69
    %p78 = scmp.eq.s32.totalorder %s16, 0
    %p79 = por %p77, %p78
    %p80 = scmp.ne.s32.totalorder %s68, %s69
    %p81 = scmp.eq.s32.totalorder %s17, 1
    %p82 = por %p80, %p81
    %p84 = scmp.ne.s32.totalorder %s69, %s83
    %p85 = scmp.eq.s32.totalorder %s17, 0
    %p86 = por %p84, %p85
    %s88 = sadd.s32 %s87, 1
    %p91 = scmp.eq.s32.totalorder %s11, 1
    %p92 = scmp.ne.s32.totalorder %s87, %s89
    %p93 = scmp.eq.s32.totalorder %s11, 0
    %p94 = por %p92, %p93
    %p95 = scmp.ne.s32.totalorder %s87, %s89
    %p96 = scmp.eq.s32.totalorder %s16, 1
    %p97 = por %p95, %p96
    %p98 = scmp.ne.s32.totalorder %s89, %s90
    %p99 = scmp.eq.s32.totalorder %s16, 0
    %p100 = por %p98, %p99
    %p101 = scmp.ne.s32.totalorder %s89, %s90
    %p102 = scmp.eq.s32.totalorder %s17, 1
    %p103 = por %p101, %p102
    %p105 = scmp.ne.s32.totalorder %s90, %s104
    %p106 = scmp.eq.s32.totalorder %s17, 0
    %p107 = por %p105, %p106
    %s109 = sadd.s32 %s108, 1
    %p112 = scmp.eq.s32.totalorder %s11, 1
    %p113 = scmp.ne.s32.totalorder %s108, %s110
    %p114 = scmp.eq.s32.totalorder %s11, 0
    %p115 = por %p113, %p114
    %p116 = scmp.ne.s32.totalorder %s108, %s110
    %p117 = scmp.eq.s32.totalorder %s16, 1
    %p118 = por %p116, %p117
    %p119 = scmp.ne.s32.totalorder %s110, %s111
    %p120 = scmp.eq.s32.totalorder %s16, 0
    %p121 = por %p119, %p120
    %p122 = scmp.ne.s32.totalorder %s110, %s111
    %p123 = scmp.eq.s32.totalorder %s17, 1
    %p124 = por %p122, %p123
    %p126 = scmp.ne.s32.totalorder %s111, %s125
    %p127 = scmp.eq.s32.totalorder %s17, 0
    %p128 = por %p126, %p127
    %s129 = ssub.s32 %s11, %s18
    %p130 = scmp.eq.s32.totalorder %s129, 0
    %s132 = sadd.s32 %s131, 1
    %s133 = scalar_select %p130, %s131, %s132
    %p136 = pneg %p130
    %p137 = scmp.eq.s32.totalorder %s11, 1
    %p138 = por %p136, %p137
    %p139 = scmp.ne.s32.totalorder %s131, %s134
    %p140 = scmp.eq.s32.totalorder %s11, 0
    %p141 = por %p139, %p140
    %p142 = scmp.ne.s32.totalorder %s131, %s134
    %p143 = scmp.eq.s32.totalorder %s16, 1
    %p144 = por %p142, %p143
    %p145 = scmp.ne.s32.totalorder %s134, %s135
    %p146 = scmp.eq.s32.totalorder %s16, 0
    %p147 = por %p145, %p146
    %p148 = scmp.ne.s32.totalorder %s134, %s135
    %p149 = scmp.eq.s32.totalorder %s17, 1
    %p150 = por %p148, %p149
    %p152 = scmp.ne.s32.totalorder %s135, %s151
    %p153 = scmp.eq.s32.totalorder %s17, 0
    %p154 = por %p152, %p153
    %p155 = scmp.le.s32.totalorder 1, %s11
    %p156 = scmp.lt.s32.totalorder %s11, 3
    %p157 = pnand %p155, %p156
    %p158 = pneg %p157
    // Predicated region
    $region9: #{mlp_pallas.1} parent=5 // pred_check
      _
    $region10: #{mlp_pallas.1} parent=5 // pred_check_branch
      %160 = sbr.rel (%p157) target = $region12
    $region11: #{mlp_pallas.1} parent=5 // pred_region
      %s161 = ssub.s32 %s11, 1
      // Predicated region
      $region13: #{mlp_pallas.1} parent=11 // pred_check
        %p162 = pneg %p58
      $region14: #{mlp_pallas.1} parent=11 // pred_check_branch
        %164 = sbr.rel (%p162) target = $region16
      $region15: #{mlp_pallas.1} parent=11 // pred_region
        _
      $region16: #{mlp_pallas.1} parent=11 // pred_fallthru
        _
      // Predicated region
      $region17: #{mlp_pallas.1} parent=11 // pred_check
        %p165 = pneg %p79
      $region18: #{mlp_pallas.1} parent=11 // pred_check_branch
        %167 = sbr.rel (%p165) target = $region20
      $region19: #{mlp_pallas.1} parent=11 // pred_region
        _
      $region20: #{mlp_pallas.1} parent=11 // pred_fallthru
        _
      // Predicated region
      $region21: #{mlp_pallas.1} parent=11 // pred_check
        %p168 = pneg %p100
      $region22: #{mlp_pallas.1} parent=11 // pred_check_branch
        %170 = sbr.rel (%p168) target = $region24
      $region23: #{mlp_pallas.1} parent=11 // pred_region
        _
      $region24: #{mlp_pallas.1} parent=11 // pred_fallthru
        _
      // Predicated region
      $region25: #{mlp_pallas.1} parent=11 // pred_check
        %p171 = pneg %p121
      $region26: #{mlp_pallas.1} parent=11 // pred_check_branch
        %173 = sbr.rel (%p171) target = $region28
      $region27: #{mlp_pallas.1} parent=11 // pred_region
        _
      $region28: #{mlp_pallas.1} parent=11 // pred_fallthru
        _
    $region12: #{mlp_pallas.1} parent=5 // pred_fallthru
      _
    %p174 = scmp.lt.s32.totalorder %s11, 2
    // Predicated region
    $region29: #{mlp_pallas.1} parent=5 // pred_check
      %p175 = pneg %p174
    $region30: #{mlp_pallas.1} parent=5 // pred_check_branch
      %177 = sbr.rel (%p175) target = $region32
    $region31: #{mlp_pallas.1} parent=5 // pred_region
      // Predicated region
      $region33: #{mlp_pallas.1} parent=31 // pred_check
        %p178 = pneg %p31
      $region34: #{mlp_pallas.1} parent=31 // pred_check_branch
        %180 = sbr.rel (%p178) target = $region36
      $region35: #{mlp_pallas.1} parent=31 // pred_region
        %p181 = scmp.lt.s32.totalorder %s11, 1
        %s182 = scalar_select %p181, %s11, 1
        %s183 = smul.addr %s182, 8
        %s184 = scalar_lea.vmem %s0, %s183
      $region36: #{mlp_pallas.1} parent=31 // pred_fallthru
        _
    $region32: #{mlp_pallas.1} parent=5 // pred_fallthru
      _
    %p185 = scmp.le.s32.totalorder 1, %s11
    %p186 = scmp.lt.s32.totalorder %s11, 3
    %p187 = pnand %p185, %p186
    %p188 = pneg %p187
    // Predicated region
    $region37: #{mlp_pallas.1} parent=5 // pred_check
      _
    $region38: #{mlp_pallas.1} parent=5 // pred_check_branch
      %190 = sbr.rel (%p187) target = $region40
    $region39: #{mlp_pallas.1} parent=5 // pred_region
      %s191 = ssub.s32 %s11, 1
      %p192 = scmp.lt.s32.totalorder %s16, 1
      %s193 = scalar_select %p192, %s16, 1
      %s194 = smul.addr %s193, 8
      %s195 = scalar_lea.vmem %s0, %s194
      %p196 = pneg %p37
      %p197 = pneg %p34
      %p198 = pneg %p58
      %p199 = pneg %p55
      %p200 = pneg %p79
      %p201 = pneg %p76
      %p202 = pneg %p100
      %p203 = pneg %p97
      %p204 = pneg %p121
      %p205 = pneg %p118
      %p206 = pneg %p147
      %p207 = pneg %p144
      %p208 = scmp.lt.s32.totalorder %s16, 1
      %s209 = scalar_select %p208, %s16, 1
      %s210 = smul.addr %s209, 8
      %s211 = scalar_lea.vmem %s5, %s210
      %p212 = scmp.lt.s32.totalorder %s16, 1
      %s213 = scalar_select %p212, %s16, 1
      %s214 = smul.addr %s213, 8
      %s215 = scalar_lea.vmem %s0, %s214
      %p216 = scmp.lt.s32.totalorder %s16, 1
      %s217 = scalar_select %p216, %s16, 1
      %s218 = smul.addr %s217, 8
      %s219 = scalar_lea.vmem %s5, %s218
      %v220 = vld [vmem:[%s215] sm:$0xff]
      %v221 = vld [vmem:[%s1] sm:$0xff]
      %v222 = vld [vmem:[%s1 + $0x8] sm:$0xff]
      %v223 = vld [vmem:[%s1 + $0x10] sm:$0xff]
      %v224 = vld [vmem:[%s1 + $0x18] sm:$0xff]
      %v225 = vld [vmem:[%s1 + $0x20] sm:$0xff]
      %v226 = vld [vmem:[%s1 + $0x28] sm:$0xff]
      %v227 = vld [vmem:[%s1 + $0x30] sm:$0xff]
      %v228 = vld [vmem:[%s1 + $0x38] sm:$0xff]
      %v229 = vld [vmem:[%s1 + $0x40] sm:$0xff]
      %v230 = vld [vmem:[%s1 + $0x48] sm:$0xff]
      %v231 = vld [vmem:[%s1 + $0x50] sm:$0xff]
      %v232 = vld [vmem:[%s1 + $0x58] sm:$0xff]
      %v233 = vld [vmem:[%s1 + $0x60] sm:$0xff]
      %v234 = vld [vmem:[%s1 + $0x68] sm:$0xff]
      %v235 = vld [vmem:[%s1 + $0x70] sm:$0xff]
      %v236 = vld [vmem:[%s1 + $0x78] sm:$0xff]
      %v237 = vld [vmem:[%s1 + $0x80] sm:$0xff]
      %v238 = vld [vmem:[%s1 + $0x88] sm:$0xff]
      %v239 = vld [vmem:[%s1 + $0x90] sm:$0xff]
      %v240 = vld [vmem:[%s1 + $0x98] sm:$0xff]
      %v241 = vld [vmem:[%s1 + $0xa0] sm:$0xff]
      %v242 = vld [vmem:[%s1 + $0xa8] sm:$0xff]
      %v243 = vld [vmem:[%s1 + $0xb0] sm:$0xff]
      %v244 = vld [vmem:[%s1 + $0xb8] sm:$0xff]
      %v245 = vld [vmem:[%s1 + $0xc0] sm:$0xff]
      %v246 = vld [vmem:[%s1 + $0xc8] sm:$0xff]
      %v247 = vld [vmem:[%s1 + $0xd0] sm:$0xff]
      %v248 = vld [vmem:[%s1 + $0xd8] sm:$0xff]
      %v249 = vld [vmem:[%s1 + $0xe0] sm:$0xff]
      %v250 = vld [vmem:[%s1 + $0xe8] sm:$0xff]
      %v251 = vld [vmem:[%s1 + $0xf0] sm:$0xff]
      %v252 = vld [vmem:[%s1 + $0xf8] sm:$0xff]
      %v253 = vld [vmem:[%s1 + $0x100] sm:$0xff]
      %v254 = vld [vmem:[%s1 + $0x108] sm:$0xff]
      %v255 = vld [vmem:[%s1 + $0x110] sm:$0xff]
      %v256 = vld [vmem:[%s1 + $0x118] sm:$0xff]
      %v257 = vld [vmem:[%s1 + $0x120] sm:$0xff]
      %v258 = vld [vmem:[%s1 + $0x128] sm:$0xff]
      %v259 = vld [vmem:[%s1 + $0x130] sm:$0xff]
      %v260 = vld [vmem:[%s1 + $0x138] sm:$0xff]
      %v261 = vld [vmem:[%s1 + $0x140] sm:$0xff]
      %v262 = vld [vmem:[%s1 + $0x148] sm:$0xff]
      %v263 = vld [vmem:[%s1 + $0x150] sm:$0xff]
      %v264 = vld [vmem:[%s1 + $0x158] sm:$0xff]
      %v265 = vld [vmem:[%s1 + $0x160] sm:$0xff]
      %v266 = vld [vmem:[%s1 + $0x168] sm:$0xff]
      %v267 = vld [vmem:[%s1 + $0x170] sm:$0xff]
      %v268 = vld [vmem:[%s1 + $0x178] sm:$0xff]
      %v269 = vld [vmem:[%s1 + $0x180] sm:$0xff]
      %v270 = vld [vmem:[%s1 + $0x188] sm:$0xff]
      %v271 = vld [vmem:[%s1 + $0x190] sm:$0xff]
      %v272 = vld [vmem:[%s1 + $0x198] sm:$0xff]
      %v273 = vld [vmem:[%s1 + $0x1a0] sm:$0xff]
      %v274 = vld [vmem:[%s1 + $0x1a8] sm:$0xff]
      %v275 = vld [vmem:[%s1 + $0x1b0] sm:$0xff]
      %v276 = vld [vmem:[%s1 + $0x1b8] sm:$0xff]
      %v277 = vld [vmem:[%s1 + $0x1c0] sm:$0xff]
      %v278 = vld [vmem:[%s1 + $0x1c8] sm:$0xff]
      %v279 = vld [vmem:[%s1 + $0x1d0] sm:$0xff]
      %v280 = vld [vmem:[%s1 + $0x1d8] sm:$0xff]
      %v281 = vld [vmem:[%s1 + $0x1e0] sm:$0xff]
      %v282 = vld [vmem:[%s1 + $0x1e8] sm:$0xff]
      %v283 = vld [vmem:[%s1 + $0x1f0] sm:$0xff]
      %v284 = vld [vmem:[%s1 + $0x1f8] sm:$0xff]
      %v285 = vld [vmem:[%s1 + $0x200] sm:$0xff]
      %v286 = vld [vmem:[%s1 + $0x208] sm:$0xff]
      %v287 = vld [vmem:[%s1 + $0x210] sm:$0xff]
      %v288 = vld [vmem:[%s1 + $0x218] sm:$0xff]
      %v289 = vld [vmem:[%s1 + $0x220] sm:$0xff]
      %v290 = vld [vmem:[%s1 + $0x228] sm:$0xff]
      %v291 = vld [vmem:[%s1 + $0x230] sm:$0xff]
      %v292 = vld [vmem:[%s1 + $0x238] sm:$0xff]
      %v293 = vld [vmem:[%s1 + $0x240] sm:$0xff]
      %v294 = vld [vmem:[%s1 + $0x248] sm:$0xff]
      %v295 = vld [vmem:[%s1 + $0x250] sm:$0xff]
      %v296 = vld [vmem:[%s1 + $0x258] sm:$0xff]
      %v297 = vld [vmem:[%s1 + $0x260] sm:$0xff]
      %v298 = vld [vmem:[%s1 + $0x268] sm:$0xff]
      %v299 = vld [vmem:[%s1 + $0x270] sm:$0xff]
      %v300 = vld [vmem:[%s1 + $0x278] sm:$0xff]
      %v301 = vld [vmem:[%s1 + $0x280] sm:$0xff]
      %v302 = vld [vmem:[%s1 + $0x288] sm:$0xff]
      %v303 = vld [vmem:[%s1 + $0x290] sm:$0xff]
      %v304 = vld [vmem:[%s1 + $0x298] sm:$0xff]
      %v305 = vld [vmem:[%s1 + $0x2a0] sm:$0xff]
      %v306 = vld [vmem:[%s1 + $0x2a8] sm:$0xff]
      %v307 = vld [vmem:[%s1 + $0x2b0] sm:$0xff]
      %v308 = vld [vmem:[%s1 + $0x2b8] sm:$0xff]
      %v309 = vld [vmem:[%s1 + $0x2c0] sm:$0xff]
      %v310 = vld [vmem:[%s1 + $0x2c8] sm:$0xff]
      %v311 = vld [vmem:[%s1 + $0x2d0] sm:$0xff]
      %v312 = vld [vmem:[%s1 + $0x2d8] sm:$0xff]
      %v313 = vld [vmem:[%s1 + $0x2e0] sm:$0xff]
      %v314 = vld [vmem:[%s1 + $0x2e8] sm:$0xff]
      %v315 = vld [vmem:[%s1 + $0x2f0] sm:$0xff]
      %v316 = vld [vmem:[%s1 + $0x2f8] sm:$0xff]
      %v317 = vld [vmem:[%s1 + $0x300] sm:$0xff]
      %v318 = vld [vmem:[%s1 + $0x308] sm:$0xff]
      %v319 = vld [vmem:[%s1 + $0x310] sm:$0xff]
      %v320 = vld [vmem:[%s1 + $0x318] sm:$0xff]
      %v321 = vld [vmem:[%s1 + $0x320] sm:$0xff]
      %v322 = vld [vmem:[%s1 + $0x328] sm:$0xff]
      %v323 = vld [vmem:[%s1 + $0x330] sm:$0xff]
      %v324 = vld [vmem:[%s1 + $0x338] sm:$0xff]
      %v325 = vld [vmem:[%s1 + $0x340] sm:$0xff]
      %v326 = vld [vmem:[%s1 + $0x348] sm:$0xff]
      %v327 = vld [vmem:[%s1 + $0x350] sm:$0xff]
      %v328 = vld [vmem:[%s1 + $0x358] sm:$0xff]
      %v329 = vld [vmem:[%s1 + $0x360] sm:$0xff]
      %v330 = vld [vmem:[%s1 + $0x368] sm:$0xff]
      %v331 = vld [vmem:[%s1 + $0x370] sm:$0xff]
      %v332 = vld [vmem:[%s1 + $0x378] sm:$0xff]
      %v333 = vld [vmem:[%s1 + $0x380] sm:$0xff]
      %v334 = vld [vmem:[%s1 + $0x388] sm:$0xff]
      %v335 = vld [vmem:[%s1 + $0x390] sm:$0xff]
      %v336 = vld [vmem:[%s1 + $0x398] sm:$0xff]
      %v337 = vld [vmem:[%s1 + $0x3a0] sm:$0xff]
      %v338 = vld [vmem:[%s1 + $0x3a8] sm:$0xff]
      %v339 = vld [vmem:[%s1 + $0x3b0] sm:$0xff]
      %v340 = vld [vmem:[%s1 + $0x3b8] sm:$0xff]
      %v341 = vld [vmem:[%s1 + $0x3c0] sm:$0xff]
      %v342 = vld [vmem:[%s1 + $0x3c8] sm:$0xff]
      %v343 = vld [vmem:[%s1 + $0x3d0] sm:$0xff]
      %v344 = vld [vmem:[%s1 + $0x3d8] sm:$0xff]
      %v345 = vld [vmem:[%s1 + $0x3e0] sm:$0xff]
      %v346 = vld [vmem:[%s1 + $0x3e8] sm:$0xff]
      %v347 = vld [vmem:[%s1 + $0x3f0] sm:$0xff]
      %v348 = vld [vmem:[%s1 + $0x3f8] sm:$0xff]
      %v349 = vld [vmem:[%s2] sm:$0xff]
      %v351 = vlaneseq
      %v352 = vshrl.u32 %v351, 7
      %v353 = vsub.s32 0, %v352
      %v354 = vrot.slane %v349, %v353
      %v355 = vlaneseq
      %v356 = vshrl.u32 %v355, 7
      %v357 = vsub.s32 1, %v356
      %v358 = vrot.slane %v349, %v357
      %v359 = vlaneseq
      %v360 = vshrl.u32 %v359, 7
      %v361 = vsub.s32 2, %v360
      %v362 = vrot.slane %v349, %v361
      %v363 = vlaneseq
      %v364 = vshrl.u32 %v363, 7
      %v365 = vsub.s32 3, %v364
      %v366 = vrot.slane %v349, %v365
      %v367 = vlaneseq
      %v368 = vshrl.u32 %v367, 7
      %v369 = vsub.s32 4, %v368
      %v370 = vrot.slane %v349, %v369
      %v371 = vlaneseq
      %v372 = vshrl.u32 %v371, 7
      %v373 = vsub.s32 5, %v372
      %v374 = vrot.slane %v349, %v373
      %v375 = vlaneseq
      %v376 = vshrl.u32 %v375, 7
      %v377 = vsub.s32 6, %v376
      %v378 = vrot.slane %v349, %v377
      %v379 = vlaneseq
      %v380 = vshrl.u32 %v379, 7
      %v381 = vsub.s32 7, %v380
      %v382 = vrot.slane %v349, %v381
      %391 = vmatprep.subr.mxu0 %v342
      %392 = vmatpush1.msra.mxu0 %v341
      %393 = vmatprep.subr.mxu0 %v334
      %394 = vmatpush1.msra.mxu0 %v333
      %395 = vmatprep.subr.mxu0 %v326
      %396 = vmatpush1.msra.mxu0 %v325
      %397 = vmatprep.subr.mxu0 %v318
      %398 = vmatpush1.msra.mxu0 %v317
      %399 = vmatprep.subr.mxu0 %v310
      %400 = vmatpush1.msra.mxu0 %v309
      %401 = vmatprep.subr.mxu0 %v302
      %402 = vmatpush1.msra.mxu0 %v301
      %403 = vmatprep.subr.mxu0 %v294
      %404 = vmatpush1.msra.mxu0 %v293
      %405 = vmatprep.subr.mxu0 %v286
      %406 = vmatpush1.msra.mxu0 %v285
      %407 = vmatprep.subr.mxu0 %v278
      %408 = vmatpush1.msra.mxu0 %v277
      %409 = vmatprep.subr.mxu0 %v270
      %410 = vmatpush1.msra.mxu0 %v269
      %411 = vmatprep.subr.mxu0 %v262
      %412 = vmatpush1.msra.mxu0 %v261
      %413 = vmatprep.subr.mxu0 %v254
      %414 = vmatpush1.msra.mxu0 %v253
      %415 = vmatprep.subr.mxu0 %v246
      %416 = vmatpush1.msra.mxu0 %v245
      %417 = vmatprep.subr.mxu0 %v238
      %418 = vmatpush1.msra.mxu0 %v237
      %419 = vmatprep.subr.mxu0 %v230
      %420 = vmatpush1.msra.mxu0 %v229
      %421 = vmatprep.subr.mxu0 %v222
      %422 = vmatpush1.msra.mxu0 %v221
      %423 = vmatprep.subr.mxu0 0.0
      %424 = vmatpush2.msra.mxu0 0.0
      %425 = vmatprep.subr.mxu0 0.0
      %426 = vmatpush2.msra.mxu0 0.0
      %427 = vmatprep.subr.mxu0 0.0
      %428 = vmatpush2.msra.mxu0 0.0
      %429 = vmatprep.subr.mxu0 0.0
      %430 = vmatpush2.msra.mxu0 0.0
      %431 = vmatprep.subr.mxu0 0.0
      %432 = vmatpush2.msra.mxu0 0.0
      %433 = vmatprep.subr.mxu0 0.0
      %434 = vmatpush2.msra.mxu0 0.0
      %435 = vmatprep.subr.mxu0 0.0
      %436 = vmatpush2.msra.mxu0 0.0
      %437 = vmatprep.subr.mxu0 0.0
      %438 = vmatpush2.msra.mxu0 0.0
      %439 = vmatprep.subr.mxu0 0.0
      %440 = vmatpush2.msra.mxu0 0.0
      %441 = vmatprep.subr.mxu0 0.0
      %442 = vmatpush2.msra.mxu0 0.0
      %443 = vmatprep.subr.mxu0 0.0
      %444 = vmatpush2.msra.mxu0 0.0
      %445 = vmatprep.subr.mxu0 0.0
      %446 = vmatpush2.msra.mxu0 0.0
      %447 = vmatprep.subr.mxu0 0.0
      %448 = vmatpush2.msra.mxu0 0.0
      %449 = vmatprep.subr.mxu0 0.0
      %450 = vmatpush2.msra.mxu0 0.0
      %451 = vmatprep.subr.mxu0 0.0
      %452 = vmatpush2.msra.mxu0 0.0
      %453 = vmatprep.subr.mxu0 0.0
      %454 = vmatpush2.msra.mxu0 0.0
      %455 = vmatprep.mubr.f32.mxu0 0.0
      %456 = vmatmul.mubr.f32.gmra.mxu0 %v220
      %v457 = vpop.f32.mrf.mxu0
      %v458 = vadd.f32 %v354, %v457
      %v459 = vpop.f32.mrf.mxu0
      %v460 = vadd.f32 %v358, %v459
      %461 = vdwg.mxu0
      %462 = vmatprep.subr.mxu0 %v344
      %463 = vmatpush1.msra.mxu0 %v343
      %464 = vmatprep.subr.mxu0 %v336
      %465 = vmatpush1.msra.mxu0 %v335
      %466 = vmatprep.subr.mxu0 %v328
      %467 = vmatpush1.msra.mxu0 %v327
      %468 = vmatprep.subr.mxu0 %v320
      %469 = vmatpush1.msra.mxu0 %v319
      %470 = vmatprep.subr.mxu0 %v312
      %471 = vmatpush1.msra.mxu0 %v311
      %472 = vmatprep.subr.mxu0 %v304
      %473 = vmatpush1.msra.mxu0 %v303
      %474 = vmatprep.subr.mxu0 %v296
      %475 = vmatpush1.msra.mxu0 %v295
      %476 = vmatprep.subr.mxu0 %v288
      %477 = vmatpush1.msra.mxu0 %v287
      %478 = vmatprep.subr.mxu0 %v280
      %479 = vmatpush1.msra.mxu0 %v279
      %480 = vmatprep.subr.mxu0 %v272
      %481 = vmatpush1.msra.mxu0 %v271
      %482 = vmatprep.subr.mxu0 %v264
      %483 = vmatpush1.msra.mxu0 %v263
      %484 = vmatprep.subr.mxu0 %v256
      %485 = vmatpush1.msra.mxu0 %v255
      %486 = vmatprep.subr.mxu0 %v248
      %487 = vmatpush1.msra.mxu0 %v247
      %488 = vmatprep.subr.mxu0 %v240
      %489 = vmatpush1.msra.mxu0 %v239
      %490 = vmatprep.subr.mxu0 %v232
      %491 = vmatpush1.msra.mxu0 %v231
      %492 = vmatprep.subr.mxu0 %v224
      %493 = vmatpush1.msra.mxu0 %v223
      %494 = vmatprep.subr.mxu0 0.0
      %495 = vmatpush2.msra.mxu0 0.0
      %496 = vmatprep.subr.mxu0 0.0
      %497 = vmatpush2.msra.mxu0 0.0
      %498 = vmatprep.subr.mxu0 0.0
      %499 = vmatpush2.msra.mxu0 0.0
      %500 = vmatprep.subr.mxu0 0.0
      %501 = vmatpush2.msra.mxu0 0.0
      %502 = vmatprep.subr.mxu0 0.0
      %503 = vmatpush2.msra.mxu0 0.0
      %504 = vmatprep.subr.mxu0 0.0
      %505 = vmatpush2.msra.mxu0 0.0
      %506 = vmatprep.subr.mxu0 0.0
      %507 = vmatpush2.msra.mxu0 0.0
      %508 = vmatprep.subr.mxu0 0.0
      %509 = vmatpush2.msra.mxu0 0.0
      %510 = vmatprep.subr.mxu0 0.0
      %511 = vmatpush2.msra.mxu0 0.0
      %512 = vmatprep.subr.mxu0 0.0
      %513 = vmatpush2.msra.mxu0 0.0
      %514 = vmatprep.subr.mxu0 0.0
      %515 = vmatpush2.msra.mxu0 0.0
      %516 = vmatprep.subr.mxu0 0.0
      %517 = vmatpush2.msra.mxu0 0.0
      %518 = vmatprep.subr.mxu0 0.0
      %519 = vmatpush2.msra.mxu0 0.0
      %520 = vmatprep.subr.mxu0 0.0
      %521 = vmatpush2.msra.mxu0 0.0
      %522 = vmatprep.subr.mxu0 0.0
      %523 = vmatpush2.msra.mxu0 0.0
      %524 = vmatprep.subr.mxu0 0.0
      %525 = vmatpush2.msra.mxu0 0.0
      %526 = vmatprep.mubr.f32.mxu0 0.0
      %527 = vmatmul.mubr.f32.gmra.mxu0 %v220
      %v528 = vpop.f32.mrf.mxu0
      %v529 = vadd.f32 %v362, %v528
      %v530 = vpop.f32.mrf.mxu0
      %v531 = vadd.f32 %v366, %v530
      %532 = vdwg.mxu0
      %533 = vmatprep.subr.mxu0 %v346
      %534 = vmatpush1.msra.mxu0 %v345
      %535 = vmatprep.subr.mxu0 %v338
      %536 = vmatpush1.msra.mxu0 %v337
      %537 = vmatprep.subr.mxu0 %v330
      %538 = vmatpush1.msra.mxu0 %v329
      %539 = vmatprep.subr.mxu0 %v322
      %540 = vmatpush1.msra.mxu0 %v321
      %541 = vmatprep.subr.mxu0 %v314
      %542 = vmatpush1.msra.mxu0 %v313
      %543 = vmatprep.subr.mxu0 %v306
      %544 = vmatpush1.msra.mxu0 %v305
      %545 = vmatprep.subr.mxu0 %v298
      %546 = vmatpush1.msra.mxu0 %v297
      %547 = vmatprep.subr.mxu0 %v290
      %548 = vmatpush1.msra.mxu0 %v289
      %549 = vmatprep.subr.mxu0 %v282
      %550 = vmatpush1.msra.mxu0 %v281
      %551 = vmatprep.subr.mxu0 %v274
      %552 = vmatpush1.msra.mxu0 %v273
      %553 = vmatprep.subr.mxu0 %v266
      %554 = vmatpush1.msra.mxu0 %v265
      %555 = vmatprep.subr.mxu0 %v258
      %556 = vmatpush1.msra.mxu0 %v257
      %557 = vmatprep.subr.mxu0 %v250
      %558 = vmatpush1.msra.mxu0 %v249
      %559 = vmatprep.subr.mxu0 %v242
      %560 = vmatpush1.msra.mxu0 %v241
      %561 = vmatprep.subr.mxu0 %v234
      %562 = vmatpush1.msra.mxu0 %v233
      %563 = vmatprep.subr.mxu0 %v226
      %564 = vmatpush1.msra.mxu0 %v225
      %565 = vmatprep.subr.mxu0 0.0
      %566 = vmatpush2.msra.mxu0 0.0
      %567 = vmatprep.subr.mxu0 0.0
      %568 = vmatpush2.msra.mxu0 0.0
      %569 = vmatprep.subr.mxu0 0.0
      %570 = vmatpush2.msra.mxu0 0.0
      %571 = vmatprep.subr.mxu0 0.0
      %572 = vmatpush2.msra.mxu0 0.0
      %573 = vmatprep.subr.mxu0 0.0
      %574 = vmatpush2.msra.mxu0 0.0
      %575 = vmatprep.subr.mxu0 0.0
      %576 = vmatpush2.msra.mxu0 0.0
      %577 = vmatprep.subr.mxu0 0.0
      %578 = vmatpush2.msra.mxu0 0.0
      %579 = vmatprep.subr.mxu0 0.0
      %580 = vmatpush2.msra.mxu0 0.0
      %581 = vmatprep.subr.mxu0 0.0
      %582 = vmatpush2.msra.mxu0 0.0
      %583 = vmatprep.subr.mxu0 0.0
      %584 = vmatpush2.msra.mxu0 0.0
      %585 = vmatprep.subr.mxu0 0.0
      %586 = vmatpush2.msra.mxu0 0.0
      %587 = vmatprep.subr.mxu0 0.0
      %588 = vmatpush2.msra.mxu0 0.0
      %589 = vmatprep.subr.mxu0 0.0
      %590 = vmatpush2.msra.mxu0 0.0
      %591 = vmatprep.subr.mxu0 0.0
      %592 = vmatpush2.msra.mxu0 0.0
      %593 = vmatprep.subr.mxu0 0.0
      %594 = vmatpush2.msra.mxu0 0.0
      %595 = vmatprep.subr.mxu0 0.0
      %596 = vmatpush2.msra.mxu0 0.0
      %597 = vmatprep.mubr.f32.mxu0 0.0
      %598 = vmatmul.mubr.f32.gmra.mxu0 %v220
      %v599 = vpop.f32.mrf.mxu0
      %v600 = vadd.f32 %v370, %v599
      %v601 = vpop.f32.mrf.mxu0
      %v602 = vadd.f32 %v374, %v601
      %603 = vdwg.mxu0
      %604 = vmatprep.subr.mxu0 %v348
      %605 = vmatpush1.msra.mxu0 %v347
      %606 = vmatprep.subr.mxu0 %v340
      %607 = vmatpush1.msra.mxu0 %v339
      %608 = vmatprep.subr.mxu0 %v332
      %609 = vmatpush1.msra.mxu0 %v331
      %610 = vmatprep.subr.mxu0 %v324
      %611 = vmatpush1.msra.mxu0 %v323
      %612 = vmatprep.subr.mxu0 %v316
      %613 = vmatpush1.msra.mxu0 %v315
      %614 = vmatprep.subr.mxu0 %v308
      %615 = vmatpush1.msra.mxu0 %v307
      %616 = vmatprep.subr.mxu0 %v300
      %617 = vmatpush1.msra.mxu0 %v299
      %618 = vmatprep.subr.mxu0 %v292
      %619 = vmatpush1.msra.mxu0 %v291
      %620 = vmatprep.subr.mxu0 %v284
      %621 = vmatpush1.msra.mxu0 %v283
      %622 = vmatprep.subr.mxu0 %v276
      %623 = vmatpush1.msra.mxu0 %v275
      %624 = vmatprep.subr.mxu0 %v268
      %625 = vmatpush1.msra.mxu0 %v267
      %626 = vmatprep.subr.mxu0 %v260
      %627 = vmatpush1.msra.mxu0 %v259
      %628 = vmatprep.subr.mxu0 %v252
      %629 = vmatpush1.msra.mxu0 %v251
      %630 = vmatprep.subr.mxu0 %v244
      %631 = vmatpush1.msra.mxu0 %v243
      %632 = vmatprep.subr.mxu0 %v236
      %633 = vmatpush1.msra.mxu0 %v235
      %634 = vmatprep.subr.mxu0 %v228
      %635 = vmatpush1.msra.mxu0 %v227
      %636 = vmatprep.subr.mxu0 0.0
      %637 = vmatpush2.msra.mxu0 0.0
      %638 = vmatprep.subr.mxu0 0.0
      %639 = vmatpush2.msra.mxu0 0.0
      %640 = vmatprep.subr.mxu0 0.0
      %641 = vmatpush2.msra.mxu0 0.0
      %642 = vmatprep.subr.mxu0 0.0
      %643 = vmatpush2.msra.mxu0 0.0
      %644 = vmatprep.subr.mxu0 0.0
      %645 = vmatpush2.msra.mxu0 0.0
      %646 = vmatprep.subr.mxu0 0.0
      %647 = vmatpush2.msra.mxu0 0.0
      %648 = vmatprep.subr.mxu0 0.0
      %649 = vmatpush2.msra.mxu0 0.0
      %650 = vmatprep.subr.mxu0 0.0
      %651 = vmatpush2.msra.mxu0 0.0
      %652 = vmatprep.subr.mxu0 0.0
      %653 = vmatpush2.msra.mxu0 0.0
      %654 = vmatprep.subr.mxu0 0.0
      %655 = vmatpush2.msra.mxu0 0.0
      %656 = vmatprep.subr.mxu0 0.0
      %657 = vmatpush2.msra.mxu0 0.0
      %658 = vmatprep.subr.mxu0 0.0
      %659 = vmatpush2.msra.mxu0 0.0
      %660 = vmatprep.subr.mxu0 0.0
      %661 = vmatpush2.msra.mxu0 0.0
      %662 = vmatprep.subr.mxu0 0.0
      %663 = vmatpush2.msra.mxu0 0.0
      %664 = vmatprep.subr.mxu0 0.0
      %665 = vmatpush2.msra.mxu0 0.0
      %666 = vmatprep.subr.mxu0 0.0
      %667 = vmatpush2.msra.mxu0 0.0
      %668 = vmatprep.mubr.f32.mxu0 0.0
      %669 = vmatmul.mubr.f32.gmra.mxu0 %v220
      %v670 = vpop.f32.mrf.mxu0
      %v671 = vadd.f32 %v378, %v670
      %v672 = vpop.f32.mrf.mxu0
      %v673 = vadd.f32 %v382, %v672
      %674 = vdwg.mxu0
      %v675 = vmax.f32 %v458, 0.0
      %v676 = vmax.f32 %v460, 0.0
      %v677 = vmax.f32 %v529, 0.0
      %v678 = vmax.f32 %v531, 0.0
      %v679 = vmax.f32 %v600, 0.0
      %v680 = vmax.f32 %v602, 0.0
      %v681 = vmax.f32 %v671, 0.0
      %v682 = vmax.f32 %v673, 0.0
      %v683 = vld [vmem:[%s3] sm:$0xff]
      %v684 = vld [vmem:[%s3 + $0x8] sm:$0xff]
      %v685 = vld [vmem:[%s3 + $0x10] sm:$0xff]
      %v686 = vld [vmem:[%s3 + $0x18] sm:$0xff]
      %v687 = vld [vmem:[%s3 + $0x20] sm:$0xff]
      %v688 = vld [vmem:[%s3 + $0x28] sm:$0xff]
      %v689 = vld [vmem:[%s3 + $0x30] sm:$0xff]
      %v690 = vld [vmem:[%s3 + $0x38] sm:$0xff]
      %v691 = vld [vmem:[%s3 + $0x40] sm:$0xff]
      %v692 = vld [vmem:[%s3 + $0x48] sm:$0xff]
      %v693 = vld [vmem:[%s3 + $0x50] sm:$0xff]
      %v694 = vld [vmem:[%s3 + $0x58] sm:$0xff]
      %v695 = vld [vmem:[%s3 + $0x60] sm:$0xff]
      %v696 = vld [vmem:[%s3 + $0x68] sm:$0xff]
      %v697 = vld [vmem:[%s3 + $0x70] sm:$0xff]
      %v698 = vld [vmem:[%s3 + $0x78] sm:$0xff]
      %v699 = vld [vmem:[%s3 + $0x80] sm:$0xff]
      %v700 = vld [vmem:[%s3 + $0x88] sm:$0xff]
      %v701 = vld [vmem:[%s3 + $0x90] sm:$0xff]
      %v702 = vld [vmem:[%s3 + $0x98] sm:$0xff]
      %v703 = vld [vmem:[%s3 + $0xa0] sm:$0xff]
      %v704 = vld [vmem:[%s3 + $0xa8] sm:$0xff]
      %v705 = vld [vmem:[%s3 + $0xb0] sm:$0xff]
      %v706 = vld [vmem:[%s3 + $0xb8] sm:$0xff]
      %v707 = vld [vmem:[%s3 + $0xc0] sm:$0xff]
      %v708 = vld [vmem:[%s3 + $0xc8] sm:$0xff]
      %v709 = vld [vmem:[%s3 + $0xd0] sm:$0xff]
      %v710 = vld [vmem:[%s3 + $0xd8] sm:$0xff]
      %v711 = vld [vmem:[%s3 + $0xe0] sm:$0xff]
      %v712 = vld [vmem:[%s3 + $0xe8] sm:$0xff]
      %v713 = vld [vmem:[%s3 + $0xf0] sm:$0xff]
      %v714 = vld [vmem:[%s3 + $0xf8] sm:$0xff]
      %v715 = vld [vmem:[%s3 + $0x100] sm:$0xff]
      %v716 = vld [vmem:[%s3 + $0x108] sm:$0xff]
      %v717 = vld [vmem:[%s3 + $0x110] sm:$0xff]
      %v718 = vld [vmem:[%s3 + $0x118] sm:$0xff]
      %v719 = vld [vmem:[%s3 + $0x120] sm:$0xff]
      %v720 = vld [vmem:[%s3 + $0x128] sm:$0xff]
      %v721 = vld [vmem:[%s3 + $0x130] sm:$0xff]
      %v722 = vld [vmem:[%s3 + $0x138] sm:$0xff]
      %v723 = vld [vmem:[%s3 + $0x140] sm:$0xff]
      %v724 = vld [vmem:[%s3 + $0x148] sm:$0xff]
      %v725 = vld [vmem:[%s3 + $0x150] sm:$0xff]
      %v726 = vld [vmem:[%s3 + $0x158] sm:$0xff]
      %v727 = vld [vmem:[%s3 + $0x160] sm:$0xff]
      %v728 = vld [vmem:[%s3 + $0x168] sm:$0xff]
      %v729 = vld [vmem:[%s3 + $0x170] sm:$0xff]
      %v730 = vld [vmem:[%s3 + $0x178] sm:$0xff]
      %v731 = vld [vmem:[%s3 + $0x180] sm:$0xff]
      %v732 = vld [vmem:[%s3 + $0x188] sm:$0xff]
      %v733 = vld [vmem:[%s3 + $0x190] sm:$0xff]
      %v734 = vld [vmem:[%s3 + $0x198] sm:$0xff]
      %v735 = vld [vmem:[%s3 + $0x1a0] sm:$0xff]
      %v736 = vld [vmem:[%s3 + $0x1a8] sm:$0xff]
      %v737 = vld [vmem:[%s3 + $0x1b0] sm:$0xff]
      %v738 = vld [vmem:[%s3 + $0x1b8] sm:$0xff]
      %v739 = vld [vmem:[%s3 + $0x1c0] sm:$0xff]
      %v740 = vld [vmem:[%s3 + $0x1c8] sm:$0xff]
      %v741 = vld [vmem:[%s3 + $0x1d0] sm:$0xff]
      %v742 = vld [vmem:[%s3 + $0x1d8] sm:$0xff]
      %v743 = vld [vmem:[%s3 + $0x1e0] sm:$0xff]
      %v744 = vld [vmem:[%s3 + $0x1e8] sm:$0xff]
      %v745 = vld [vmem:[%s3 + $0x1f0] sm:$0xff]
      %v746 = vld [vmem:[%s3 + $0x1f8] sm:$0xff]
      %v747 = vld [vmem:[%s3 + $0x200] sm:$0xff]
      %v748 = vld [vmem:[%s3 + $0x208] sm:$0xff]
      %v749 = vld [vmem:[%s3 + $0x210] sm:$0xff]
      %v750 = vld [vmem:[%s3 + $0x218] sm:$0xff]
      %v751 = vld [vmem:[%s3 + $0x220] sm:$0xff]
      %v752 = vld [vmem:[%s3 + $0x228] sm:$0xff]
      %v753 = vld [vmem:[%s3 + $0x230] sm:$0xff]
      %v754 = vld [vmem:[%s3 + $0x238] sm:$0xff]
      %v755 = vld [vmem:[%s3 + $0x240] sm:$0xff]
      %v756 = vld [vmem:[%s3 + $0x248] sm:$0xff]
      %v757 = vld [vmem:[%s3 + $0x250] sm:$0xff]
      %v758 = vld [vmem:[%s3 + $0x258] sm:$0xff]
      %v759 = vld [vmem:[%s3 + $0x260] sm:$0xff]
      %v760 = vld [vmem:[%s3 + $0x268] sm:$0xff]
      %v761 = vld [vmem:[%s3 + $0x270] sm:$0xff]
      %v762 = vld [vmem:[%s3 + $0x278] sm:$0xff]
      %v763 = vld [vmem:[%s3 + $0x280] sm:$0xff]
      %v764 = vld [vmem:[%s3 + $0x288] sm:$0xff]
      %v765 = vld [vmem:[%s3 + $0x290] sm:$0xff]
      %v766 = vld [vmem:[%s3 + $0x298] sm:$0xff]
      %v767 = vld [vmem:[%s3 + $0x2a0] sm:$0xff]
      %v768 = vld [vmem:[%s3 + $0x2a8] sm:$0xff]
      %v769 = vld [vmem:[%s3 + $0x2b0] sm:$0xff]
      %v770 = vld [vmem:[%s3 + $0x2b8] sm:$0xff]
      %v771 = vld [vmem:[%s3 + $0x2c0] sm:$0xff]
      %v772 = vld [vmem:[%s3 + $0x2c8] sm:$0xff]
      %v773 = vld [vmem:[%s3 + $0x2d0] sm:$0xff]
      %v774 = vld [vmem:[%s3 + $0x2d8] sm:$0xff]
      %v775 = vld [vmem:[%s3 + $0x2e0] sm:$0xff]
      %v776 = vld [vmem:[%s3 + $0x2e8] sm:$0xff]
      %v777 = vld [vmem:[%s3 + $0x2f0] sm:$0xff]
      %v778 = vld [vmem:[%s3 + $0x2f8] sm:$0xff]
      %v779 = vld [vmem:[%s3 + $0x300] sm:$0xff]
      %v780 = vld [vmem:[%s3 + $0x308] sm:$0xff]
      %v781 = vld [vmem:[%s3 + $0x310] sm:$0xff]
      %v782 = vld [vmem:[%s3 + $0x318] sm:$0xff]
      %v783 = vld [vmem:[%s3 + $0x320] sm:$0xff]
      %v784 = vld [vmem:[%s3 + $0x328] sm:$0xff]
      %v785 = vld [vmem:[%s3 + $0x330] sm:$0xff]
      %v786 = vld [vmem:[%s3 + $0x338] sm:$0xff]
      %v787 = vld [vmem:[%s3 + $0x340] sm:$0xff]
      %v788 = vld [vmem:[%s3 + $0x348] sm:$0xff]
      %v789 = vld [vmem:[%s3 + $0x350] sm:$0xff]
      %v790 = vld [vmem:[%s3 + $0x358] sm:$0xff]
      %v791 = vld [vmem:[%s3 + $0x360] sm:$0xff]
      %v792 = vld [vmem:[%s3 + $0x368] sm:$0xff]
      %v793 = vld [vmem:[%s3 + $0x370] sm:$0xff]
      %v794 = vld [vmem:[%s3 + $0x378] sm:$0xff]
      %v795 = vld [vmem:[%s3 + $0x380] sm:$0xff]
      %v796 = vld [vmem:[%s3 + $0x388] sm:$0xff]
      %v797 = vld [vmem:[%s3 + $0x390] sm:$0xff]
      %v798 = vld [vmem:[%s3 + $0x398] sm:$0xff]
      %v799 = vld [vmem:[%s3 + $0x3a0] sm:$0xff]
      %v800 = vld [vmem:[%s3 + $0x3a8] sm:$0xff]
      %v801 = vld [vmem:[%s3 + $0x3b0] sm:$0xff]
      %v802 = vld [vmem:[%s3 + $0x3b8] sm:$0xff]
      %v803 = vld [vmem:[%s3 + $0x3c0] sm:$0xff]
      %v804 = vld [vmem:[%s3 + $0x3c8] sm:$0xff]
      %v805 = vld [vmem:[%s3 + $0x3d0] sm:$0xff]
      %v806 = vld [vmem:[%s3 + $0x3d8] sm:$0xff]
      %v807 = vld [vmem:[%s3 + $0x3e0] sm:$0xff]
      %v808 = vld [vmem:[%s3 + $0x3e8] sm:$0xff]
      %v809 = vld [vmem:[%s3 + $0x3f0] sm:$0xff]
      %v810 = vld [vmem:[%s3 + $0x3f8] sm:$0xff]
      %v811 = vld [vmem:[%s4] sm:$0x1]
      %v813 = vlaneseq
      %v814 = vshrl.u32 %v813, 7
      %v815 = vsub.s32 0, %v814
      %v816 = vrot.slane %v811, %v815
      %818 = vmatprep.subr.mxu0 0.0
      %819 = vmatpush1.msra.mxu0 %v698
      %820 = vmatprep.subr.mxu0 0.0
      %821 = vmatpush1.msra.mxu0 %v697
      %822 = vmatprep.subr.mxu0 0.0
      %823 = vmatpush1.msra.mxu0 %v696
      %824 = vmatprep.subr.mxu0 0.0
      %825 = vmatpush1.msra.mxu0 %v695
      %826 = vmatprep.subr.mxu0 0.0
      %827 = vmatpush1.msra.mxu0 %v694
      %828 = vmatprep.subr.mxu0 0.0
      %829 = vmatpush1.msra.mxu0 %v693
      %830 = vmatprep.subr.mxu0 0.0
      %831 = vmatpush1.msra.mxu0 %v692
      %832 = vmatprep.subr.mxu0 0.0
      %833 = vmatpush1.msra.mxu0 %v691
      %834 = vmatprep.subr.mxu0 0.0
      %835 = vmatpush1.msra.mxu0 %v690
      %836 = vmatprep.subr.mxu0 0.0
      %837 = vmatpush1.msra.mxu0 %v689
      %838 = vmatprep.subr.mxu0 0.0
      %839 = vmatpush1.msra.mxu0 %v688
      %840 = vmatprep.subr.mxu0 0.0
      %841 = vmatpush1.msra.mxu0 %v687
      %842 = vmatprep.subr.mxu0 0.0
      %843 = vmatpush1.msra.mxu0 %v686
      %844 = vmatprep.subr.mxu0 0.0
      %845 = vmatpush1.msra.mxu0 %v685
      %846 = vmatprep.subr.mxu0 0.0
      %847 = vmatpush1.msra.mxu0 %v684
      %848 = vmatprep.subr.mxu0 0.0
      %849 = vmatpush1.msra.mxu0 %v683
      %850 = vmatprep.subr.mxu0 0.0
      %851 = vmatpush2.msra.mxu0 %v714
      %852 = vmatprep.subr.mxu0 0.0
      %853 = vmatpush2.msra.mxu0 %v713
      %854 = vmatprep.subr.mxu0 0.0
      %855 = vmatpush2.msra.mxu0 %v712
      %856 = vmatprep.subr.mxu0 0.0
      %857 = vmatpush2.msra.mxu0 %v711
      %858 = vmatprep.subr.mxu0 0.0
      %859 = vmatpush2.msra.mxu0 %v710
      %860 = vmatprep.subr.mxu0 0.0
      %861 = vmatpush2.msra.mxu0 %v709
      %862 = vmatprep.subr.mxu0 0.0
      %863 = vmatpush2.msra.mxu0 %v708
      %864 = vmatprep.subr.mxu0 0.0
      %865 = vmatpush2.msra.mxu0 %v707
      %866 = vmatprep.subr.mxu0 0.0
      %867 = vmatpush2.msra.mxu0 %v706
      %868 = vmatprep.subr.mxu0 0.0
      %869 = vmatpush2.msra.mxu0 %v705
      %870 = vmatprep.subr.mxu0 0.0
      %871 = vmatpush2.msra.mxu0 %v704
      %872 = vmatprep.subr.mxu0 0.0
      %873 = vmatpush2.msra.mxu0 %v703
      %874 = vmatprep.subr.mxu0 0.0
      %875 = vmatpush2.msra.mxu0 %v702
      %876 = vmatprep.subr.mxu0 0.0
      %877 = vmatpush2.msra.mxu0 %v701
      %878 = vmatprep.subr.mxu0 0.0
      %879 = vmatpush2.msra.mxu0 %v700
      %880 = vmatprep.subr.mxu0 0.0
      %881 = vmatpush2.msra.mxu0 %v699
      %882 = vmatprep.mubr.f32.mxu0 %v676
      %883 = vmatmul.mubr.f32.gmra.mxu0 %v675
      %v884 = vpop.f32.mrf.mxu0
      %v885 = vadd.f32 %v816, %v884
      %v886 = vpop.f32.mrf.mxu0
      %887 = vdwg.mxu0
      %888 = vmatprep.subr.mxu0 0.0
      %889 = vmatpush1.msra.mxu0 %v730
      %890 = vmatprep.subr.mxu0 0.0
      %891 = vmatpush1.msra.mxu0 %v729
      %892 = vmatprep.subr.mxu0 0.0
      %893 = vmatpush1.msra.mxu0 %v728
      %894 = vmatprep.subr.mxu0 0.0
      %895 = vmatpush1.msra.mxu0 %v727
      %896 = vmatprep.subr.mxu0 0.0
      %897 = vmatpush1.msra.mxu0 %v726
      %898 = vmatprep.subr.mxu0 0.0
      %899 = vmatpush1.msra.mxu0 %v725
      %900 = vmatprep.subr.mxu0 0.0
      %901 = vmatpush1.msra.mxu0 %v724
      %902 = vmatprep.subr.mxu0 0.0
      %903 = vmatpush1.msra.mxu0 %v723
      %904 = vmatprep.subr.mxu0 0.0
      %905 = vmatpush1.msra.mxu0 %v722
      %906 = vmatprep.subr.mxu0 0.0
      %907 = vmatpush1.msra.mxu0 %v721
      %908 = vmatprep.subr.mxu0 0.0
      %909 = vmatpush1.msra.mxu0 %v720
      %910 = vmatprep.subr.mxu0 0.0
      %911 = vmatpush1.msra.mxu0 %v719
      %912 = vmatprep.subr.mxu0 0.0
      %913 = vmatpush1.msra.mxu0 %v718
      %914 = vmatprep.subr.mxu0 0.0
      %915 = vmatpush1.msra.mxu0 %v717
      %916 = vmatprep.subr.mxu0 0.0
      %917 = vmatpush1.msra.mxu0 %v716
      %918 = vmatprep.subr.mxu0 0.0
      %919 = vmatpush1.msra.mxu0 %v715
      %920 = vmatprep.subr.mxu0 0.0
      %921 = vmatpush2.msra.mxu0 %v746
      %922 = vmatprep.subr.mxu0 0.0
      %923 = vmatpush2.msra.mxu0 %v745
      %924 = vmatprep.subr.mxu0 0.0
      %925 = vmatpush2.msra.mxu0 %v744
      %926 = vmatprep.subr.mxu0 0.0
      %927 = vmatpush2.msra.mxu0 %v743
      %928 = vmatprep.subr.mxu0 0.0
      %929 = vmatpush2.msra.mxu0 %v742
      %930 = vmatprep.subr.mxu0 0.0
      %931 = vmatpush2.msra.mxu0 %v741
      %932 = vmatprep.subr.mxu0 0.0
      %933 = vmatpush2.msra.mxu0 %v740
      %934 = vmatprep.subr.mxu0 0.0
      %935 = vmatpush2.msra.mxu0 %v739
      %936 = vmatprep.subr.mxu0 0.0
      %937 = vmatpush2.msra.mxu0 %v738
      %938 = vmatprep.subr.mxu0 0.0
      %939 = vmatpush2.msra.mxu0 %v737
      %940 = vmatprep.subr.mxu0 0.0
      %941 = vmatpush2.msra.mxu0 %v736
      %942 = vmatprep.subr.mxu0 0.0
      %943 = vmatpush2.msra.mxu0 %v735
      %944 = vmatprep.subr.mxu0 0.0
      %945 = vmatpush2.msra.mxu0 %v734
      %946 = vmatprep.subr.mxu0 0.0
      %947 = vmatpush2.msra.mxu0 %v733
      %948 = vmatprep.subr.mxu0 0.0
      %949 = vmatpush2.msra.mxu0 %v732
      %950 = vmatprep.subr.mxu0 0.0
      %951 = vmatpush2.msra.mxu0 %v731
      %952 = vmatprep.mubr.f32.mxu0 %v678
      %953 = vmatmul.mubr.f32.gmra.mxu0 %v677
      %v954 = vpop.f32.mrf.mxu0
      %v955 = vadd.f32 %v885, %v954
      %v956 = vpop.f32.mrf.mxu0
      %957 = vdwg.mxu0
      %958 = vmatprep.subr.mxu0 0.0
      %959 = vmatpush1.msra.mxu0 %v762
      %960 = vmatprep.subr.mxu0 0.0
      %961 = vmatpush1.msra.mxu0 %v761
      %962 = vmatprep.subr.mxu0 0.0
      %963 = vmatpush1.msra.mxu0 %v760
      %964 = vmatprep.subr.mxu0 0.0
      %965 = vmatpush1.msra.mxu0 %v759
      %966 = vmatprep.subr.mxu0 0.0
      %967 = vmatpush1.msra.mxu0 %v758
      %968 = vmatprep.subr.mxu0 0.0
      %969 = vmatpush1.msra.mxu0 %v757
      %970 = vmatprep.subr.mxu0 0.0
      %971 = vmatpush1.msra.mxu0 %v756
      %972 = vmatprep.subr.mxu0 0.0
      %973 = vmatpush1.msra.mxu0 %v755
      %974 = vmatprep.subr.mxu0 0.0
      %975 = vmatpush1.msra.mxu0 %v754
      %976 = vmatprep.subr.mxu0 0.0
      %977 = vmatpush1.msra.mxu0 %v753
      %978 = vmatprep.subr.mxu0 0.0
      %979 = vmatpush1.msra.mxu0 %v752
      %980 = vmatprep.subr.mxu0 0.0
      %981 = vmatpush1.msra.mxu0 %v751
      %982 = vmatprep.subr.mxu0 0.0
      %983 = vmatpush1.msra.mxu0 %v750
      %984 = vmatprep.subr.mxu0 0.0
      %985 = vmatpush1.msra.mxu0 %v749
      %986 = vmatprep.subr.mxu0 0.0
      %987 = vmatpush1.msra.mxu0 %v748
      %988 = vmatprep.subr.mxu0 0.0
      %989 = vmatpush1.msra.mxu0 %v747
      %990 = vmatprep.subr.mxu0 0.0
      %991 = vmatpush2.msra.mxu0 %v778
      %992 = vmatprep.subr.mxu0 0.0
      %993 = vmatpush2.msra.mxu0 %v777
      %994 = vmatprep.subr.mxu0 0.0
      %995 = vmatpush2.msra.mxu0 %v776
      %996 = vmatprep.subr.mxu0 0.0
      %997 = vmatpush2.msra.mxu0 %v775
      %998 = vmatprep.subr.mxu0 0.0
      %999 = vmatpush2.msra.mxu0 %v774
      %1000 = vmatprep.subr.mxu0 0.0
      %1001 = vmatpush2.msra.mxu0 %v773
      %1002 = vmatprep.subr.mxu0 0.0
      %1003 = vmatpush2.msra.mxu0 %v772
      %1004 = vmatprep.subr.mxu0 0.0
      %1005 = vmatpush2.msra.mxu0 %v771
      %1006 = vmatprep.subr.mxu0 0.0
      %1007 = vmatpush2.msra.mxu0 %v770
      %1008 = vmatprep.subr.mxu0 0.0
      %1009 = vmatpush2.msra.mxu0 %v769
      %1010 = vmatprep.subr.mxu0 0.0
      %1011 = vmatpush2.msra.mxu0 %v768
      %1012 = vmatprep.subr.mxu0 0.0
      %1013 = vmatpush2.msra.mxu0 %v767
      %1014 = vmatprep.subr.mxu0 0.0
      %1015 = vmatpush2.msra.mxu0 %v766
      %1016 = vmatprep.subr.mxu0 0.0
      %1017 = vmatpush2.msra.mxu0 %v765
      %1018 = vmatprep.subr.mxu0 0.0
      %1019 = vmatpush2.msra.mxu0 %v764
      %1020 = vmatprep.subr.mxu0 0.0
      %1021 = vmatpush2.msra.mxu0 %v763
      %1022 = vmatprep.mubr.f32.mxu0 %v680
      %1023 = vmatmul.mubr.f32.gmra.mxu0 %v679
      %v1024 = vpop.f32.mrf.mxu0
      %v1025 = vadd.f32 %v955, %v1024
      %v1026 = vpop.f32.mrf.mxu0
      %1027 = vdwg.mxu0
      %1028 = vmatprep.subr.mxu0 0.0
      %1029 = vmatpush1.msra.mxu0 %v794
      %1030 = vmatprep.subr.mxu0 0.0
      %1031 = vmatpush1.msra.mxu0 %v793
      %1032 = vmatprep.subr.mxu0 0.0
      %1033 = vmatpush1.msra.mxu0 %v792
      %1034 = vmatprep.subr.mxu0 0.0
      %1035 = vmatpush1.msra.mxu0 %v791
      %1036 = vmatprep.subr.mxu0 0.0
      %1037 = vmatpush1.msra.mxu0 %v790
      %1038 = vmatprep.subr.mxu0 0.0
      %1039 = vmatpush1.msra.mxu0 %v789
      %1040 = vmatprep.subr.mxu0 0.0
      %1041 = vmatpush1.msra.mxu0 %v788
      %1042 = vmatprep.subr.mxu0 0.0
      %1043 = vmatpush1.msra.mxu0 %v787
      %1044 = vmatprep.subr.mxu0 0.0
      %1045 = vmatpush1.msra.mxu0 %v786
      %1046 = vmatprep.subr.mxu0 0.0
      %1047 = vmatpush1.msra.mxu0 %v785
      %1048 = vmatprep.subr.mxu0 0.0
      %1049 = vmatpush1.msra.mxu0 %v784
      %1050 = vmatprep.subr.mxu0 0.0
      %1051 = vmatpush1.msra.mxu0 %v783
      %1052 = vmatprep.subr.mxu0 0.0
      %1053 = vmatpush1.msra.mxu0 %v782
      %1054 = vmatprep.subr.mxu0 0.0
      %1055 = vmatpush1.msra.mxu0 %v781
      %1056 = vmatprep.subr.mxu0 0.0
      %1057 = vmatpush1.msra.mxu0 %v780
      %1058 = vmatprep.subr.mxu0 0.0
      %1059 = vmatpush1.msra.mxu0 %v779
      %1060 = vmatprep.subr.mxu0 0.0
      %1061 = vmatpush2.msra.mxu0 %v810
      %1062 = vmatprep.subr.mxu0 0.0
      %1063 = vmatpush2.msra.mxu0 %v809
      %1064 = vmatprep.subr.mxu0 0.0
      %1065 = vmatpush2.msra.mxu0 %v808
      %1066 = vmatprep.subr.mxu0 0.0
      %1067 = vmatpush2.msra.mxu0 %v807
      %1068 = vmatprep.subr.mxu0 0.0
      %1069 = vmatpush2.msra.mxu0 %v806
      %1070 = vmatprep.subr.mxu0 0.0
      %1071 = vmatpush2.msra.mxu0 %v805
      %1072 = vmatprep.subr.mxu0 0.0
      %1073 = vmatpush2.msra.mxu0 %v804
      %1074 = vmatprep.subr.mxu0 0.0
      %1075 = vmatpush2.msra.mxu0 %v803
      %1076 = vmatprep.subr.mxu0 0.0
      %1077 = vmatpush2.msra.mxu0 %v802
      %1078 = vmatprep.subr.mxu0 0.0
      %1079 = vmatpush2.msra.mxu0 %v801
      %1080 = vmatprep.subr.mxu0 0.0
      %1081 = vmatpush2.msra.mxu0 %v800
      %1082 = vmatprep.subr.mxu0 0.0
      %1083 = vmatpush2.msra.mxu0 %v799
      %1084 = vmatprep.subr.mxu0 0.0
      %1085 = vmatpush2.msra.mxu0 %v798
      %1086 = vmatprep.subr.mxu0 0.0
      %1087 = vmatpush2.msra.mxu0 %v797
      %1088 = vmatprep.subr.mxu0 0.0
      %1089 = vmatpush2.msra.mxu0 %v796
      %1090 = vmatprep.subr.mxu0 0.0
      %1091 = vmatpush2.msra.mxu0 %v795
      %1092 = vmatprep.mubr.f32.mxu0 %v682
      %1093 = vmatmul.mubr.f32.gmra.mxu0 %v681
      %v1094 = vpop.f32.mrf.mxu0
      %v1095 = vadd.f32 %v1025, %v1094
      %v1096 = vpop.f32.mrf.mxu0
      %1097 = vdwg.mxu0
      %1098 = vst [vmem:[%s219] sm:$0xff] %v1095
      %p1099 = scmp.lt.s32.totalorder %s16, 1
      %s1100 = scalar_select %p1099, %s16, 1
      %s1101 = smul.addr %s1100, 8
      %s1102 = scalar_lea.vmem %s5, %s1101
      // Predicated region
      $region41: #{mlp_pallas.1} parent=39 // pred_check
        %p1103 = pneg %p144
      $region42: #{mlp_pallas.1} parent=39 // pred_check_branch
        %1105 = sbr.rel (%p1103) target = $region44
      $region43: #{mlp_pallas.1} parent=39 // pred_region
        _
      $region44: #{mlp_pallas.1} parent=39 // pred_fallthru
        _
    $region40: #{mlp_pallas.1} parent=5 // pred_fallthru
      _
    %p1106 = scmp.le.s32.totalorder 2, %s11
    // Predicated region
    $region45: #{mlp_pallas.1} parent=5 // pred_check
      %p1107 = pneg %p1106
    $region46: #{mlp_pallas.1} parent=5 // pred_check_branch
      %1109 = sbr.rel (%p1107) target = $region48
    $region47: #{mlp_pallas.1} parent=5 // pred_region
      %s1110 = ssub.s32 %s11, 2
      // Predicated region
      $region49: #{mlp_pallas.1} parent=47 // pred_check
        %p1111 = pneg %p150
      $region50: #{mlp_pallas.1} parent=47 // pred_check_branch
        %1113 = sbr.rel (%p1111) target = $region52
      $region51: #{mlp_pallas.1} parent=47 // pred_region
        %p1114 = scmp.lt.s32.totalorder %s17, 1
        %s1115 = scalar_select %p1114, %s17, 1
        %s1116 = smul.addr %s1115, 8
        %s1117 = scalar_lea.vmem %s5, %s1116
      $region52: #{mlp_pallas.1} parent=47 // pred_fallthru
        _
    $region48: #{mlp_pallas.1} parent=5 // pred_fallthru
      _
  $region6: #{mlp_pallas.1} parent=0 // loop_footer
    %s15 = sadd.s32 1, %s11
  $region7: #{mlp_pallas.1} parent=0 // loop_footer_branch
    %10 = sbr.rel target = $region3
  $region8: #{mlp_pallas.1} parent=0 // loop_exit
    _

</llo_original>
